<compile_context>
chip_gen: v7x
topology: tpu7x:2x2x1
jax: 0.10.0
libtpu: 0.0.40
codegen_flags: <defaults>
</compile_context>

<pallas_src>
import functools

import jax
import jax.numpy as jnp
from jax.experimental import pallas as pl
from jax.experimental.pallas import tpu as pltpu

_MASK = -1e30  # "minus infinity" for padded x columns: exp(_MASK - m) == 0.


def _fit_loss_kernel(y_ref, xs_ref, out_ref, *, yw_col):
    # y_ref:   (tm, K_aug)    [y | 1 | -s||y||^2 | y_w | 0...]  tile of y points
    # xs_ref:  (K_aug, n_pad) [(2s)*x^T ; bias ; 1 ; 0...]      grid-invariant
    # out_ref: (tm, 1)        per-y partial: -y_w[j] * logsumexp_i C[i, j]
    c = jnp.dot(y_ref[...], xs_ref[...],
                preferred_element_type=jnp.float32,
                precision=jax.lax.Precision.HIGHEST)       # MXU  (tm, n_pad) == C^T
    m = jnp.max(c, axis=1, keepdims=True)                  # XLU  (tm, 1)
    p = jnp.exp(c - m)                                     # EUP  (tm, n_pad)
    ssum = jnp.sum(p, axis=1, keepdims=True)               # XLU  (tm, 1)
    lse = m + jnp.log(ssum)
    yw = y_ref[:, yw_col:yw_col + 1]                       # (tm, 1), same block as y
    out_ref[...] = -(lse * yw)


def fit_loss(x, x_w, y, y_w, sigma, scale_factor, *, tm=None):
    """Pallas TPU FitLoss forward. x: (N, d), x_w: (N,), y: (M, d), y_w: (M,)."""
    d = x.shape[-1]
    x = jnp.asarray(x, jnp.float32).reshape(-1, d)
    y = jnp.asarray(y, jnp.float32).reshape(-1, d)
    N, M = x.shape[0], y.shape[0]
    x_w = jnp.asarray(x_w, jnp.float32).reshape(N)   # must be > 0 (log is taken)
    y_w = jnp.asarray(y_w, jnp.float32).reshape(M)

    # May be a Python float or a traced JAX scalar; it never enters the kernel
    # as a baked constant, so changing sigma does not force a kernel recompile.
    inv2s2 = 1.0 / (2.0 * (scale_factor * sigma) ** 2)

    # ---- tile sizes ------------------------------------------------------
    n_pad = max(128, pl.cdiv(N, 128) * 128)          # lane-dense reduced axis
    if tm is None:
        # >= 2 y-tiles whenever M > 8 (v7x: 2 TensorCores), <= 128 rows (v5e).
        tm = min(128, 8 * pl.cdiv(M, 16))
    tm = max(8, (int(tm) // 8) * 8)                  # multiple of 8 sublanes
    tm = min(tm, pl.cdiv(M, 8) * 8)
    m_pad = pl.cdiv(M, tm) * tm
    grid = m_pad // tm

    # ---- augmented contraction operands (all grid-invariant x-side work and
    # all per-y scalars hoisted into two arrays -> one DMA each per step) ---
    k_aug = pl.cdiv(d + 3, 8) * 8
    yw_col = d + 2

    bias = jnp.pad(jnp.log(x_w) - inv2s2 * jnp.sum(x * x, axis=-1),
                   (0, n_pad - N), constant_values=_MASK)            # (n_pad,)
    xs_aug = jnp.zeros((k_aug, n_pad), jnp.float32)
    xs_aug = xs_aug.at[:d, :N].set((2.0 * inv2s2) * x.T)
    xs_aug = xs_aug.at[d, :].set(bias)
    xs_aug = xs_aug.at[d + 1, :].set(1.0)

    y_aug = jnp.zeros((m_pad, k_aug), jnp.float32)
    y_aug = y_aug.at[:M, :d].set(y)
    y_aug = y_aug.at[:M, d].set(1.0)
    y_aug = y_aug.at[:M, d + 1].set(-inv2s2 * jnp.sum(y * y, axis=-1))
    y_aug = y_aug.at[:M, yw_col].set(y_w)

    kernel = functools.partial(_fit_loss_kernel, yw_col=yw_col)

    partials = pl.pallas_call(
        kernel,
        out_shape=jax.ShapeDtypeStruct((m_pad, 1), jnp.float32),
        grid_spec=pltpu.PrefetchScalarGridSpec(
            num_scalar_prefetch=0,
            grid=(grid,),
            in_specs=[
                pl.BlockSpec((tm, k_aug), lambda j: (j, 0)),      # y_aug tile
                pl.BlockSpec((k_aug, n_pad), lambda j: (0, 0)),   # xs_aug (resident)
            ],
            out_specs=pl.BlockSpec((tm, 1), lambda j: (j, 0)),    # per-y partials
        ),
        compiler_params=pltpu.CompilerParams(
            dimension_semantics=("parallel",),
        ),
    )(y_aug, xs_aug)

    return jnp.sum(partials)


def fit_loss_ref(x, x_w, y, y_w, sigma, scale_factor):
    d = x.shape[-1]
    x = jnp.asarray(x, jnp.float32).reshape(-1, d)
    y = jnp.asarray(y, jnp.float32).reshape(-1, d)
    sqd = jnp.sum((x[:, None, :] - y[None, :, :]) ** 2, axis=-1)
    C = -sqd / (2.0 * (scale_factor * sigma) ** 2) + \
        jnp.log(jnp.asarray(x_w, jnp.float32)).reshape(-1, 1)
    return -jnp.dot(jax.nn.logsumexp(C, axis=0), jnp.asarray(y_w, jnp.float32))


if __name__ == "__main__":
    key = jax.random.PRNGKey(0)
    k1, k2, k3, k4 = jax.random.split(key, 4)

    # Point-set-registration style shapes: x (N, d) model points with weights
    # x_w, y (M, d) observed points with weights y_w.
    N, M, d = 150, 200, 16
    sigma, scale_factor = 0.7, 1.5

    x = jax.random.normal(k1, (N, d), dtype=jnp.float32)
    y = jax.random.normal(k2, (M, d), dtype=jnp.float32)
    x_w = jax.nn.softmax(jax.random.normal(k3, (N,), dtype=jnp.float32))
    y_w = jax.nn.softmax(jax.random.normal(k4, (M,), dtype=jnp.float32))

    out = fit_loss(x, x_w, y, y_w, sigma, scale_factor)   # auto tm -> grid = (2,)
    out = jax.block_until_ready(out)

    ref = fit_loss_ref(x, x_w, y, y_w, sigma, scale_factor)
    assert jnp.allclose(out, ref, rtol=1e-3, atol=1e-3), (out, ref)

    print("KERNEL_OK")
</pallas_src>

<mosaic_0001>
module attributes {stable_mosaic.version = 11 : i64} {
  func.func @_fit_loss_kernel(%arg0: i32, %arg1: memref<104x24xf32, #tpu.memory_space<vmem>>, %arg2: memref<24x256xf32, #tpu.memory_space<vmem>>, %arg3: memref<104x1xf32, #tpu.memory_space<vmem>>) attributes {dimension_semantics = [#tpu.dimension_semantics<parallel>], iteration_bounds = array<i64: 2>, scalar_prefetch = 0 : i64, scratch_operands = 0 : i64, tpu.core_type = #tpu.core_type<tc>, window_params = [{transform_indices = @transform_0, window_bounds = array<i64: 104, 24>}, {pipeline_mode = #tpu.pipeline_mode<synchronous>, transform_indices = @transform_1, window_bounds = array<i64: 24, 256>}, {transform_indices = @transform_2, window_bounds = array<i64: 104, 1>}]} {
    %c0 = arith.constant 0 : index
    %c0_0 = arith.constant 0 : index
    %0 = vector.load %arg1[%c0, %c0_0] : memref<104x24xf32, #tpu.memory_space<vmem>>, vector<104x24xf32>
    %c0_1 = arith.constant 0 : index
    %c0_2 = arith.constant 0 : index
    %1 = vector.load %arg2[%c0_1, %c0_2] : memref<24x256xf32, #tpu.memory_space<vmem>>, vector<24x256xf32>
    %cst = arith.constant dense<0.000000e+00> : vector<104x256xf32>
    %2 = tpu.matmul %0, %1, %cst {dimension_numbers = #tpu.dot_dimension_numbers<[1], [0], [0], [1], [0, 0, 1, 1], [], []>, precision = #tpu.contract_precision<fp32>} : vector<104x24xf32>, vector<24x256xf32>, vector<104x256xf32> -> vector<104x256xf32>
    %cst_3 = arith.constant dense<0xFF800000> : vector<104xf32>
    %3 = vector.multi_reduction <maximumf>, %2, %cst_3 [1] : vector<104x256xf32> to vector<104xf32>
    %4 = vector.shape_cast %3 : vector<104xf32> to vector<104x1xf32>
    %5 = vector.broadcast %4 : vector<104x1xf32> to vector<104x256xf32>
    %6 = arith.subf %2, %5 : vector<104x256xf32>
    %7 = math.exp %6 : vector<104x256xf32>
    %cst_4 = arith.constant dense<0.000000e+00> : vector<104xf32>
    %8 = vector.multi_reduction <add>, %7, %cst_4 [1] : vector<104x256xf32> to vector<104xf32>
    %9 = vector.shape_cast %8 : vector<104xf32> to vector<104x1xf32>
    %10 = math.log %9 : vector<104x1xf32>
    %11 = arith.addf %4, %10 : vector<104x1xf32>
    %c0_5 = arith.constant 0 : index
    %c18 = arith.constant 18 : index
    %12 = vector.load %arg1[%c0_5, %c18] : memref<104x24xf32, #tpu.memory_space<vmem>>, vector<104x1xf32>
    %13 = arith.mulf %11, %12 : vector<104x1xf32>
    %cst_6 = arith.constant 0.000000e+00 : f32
    %14 = vector.broadcast %cst_6 : f32 to vector<104x1xf32>
    %15 = arith.subf %14, %13 : vector<104x1xf32>
    %c0_7 = arith.constant 0 : index
    %c0_8 = arith.constant 0 : index
    %16 = vector.load %arg3[%c0_7, %c0_8] : memref<104x1xf32, #tpu.memory_space<vmem>>, vector<104x1xf32>
    tpu.vector_store %arg3[%c0_7, %c0_8], %15 {strides = array<i32>} : memref<104x1xf32, #tpu.memory_space<vmem>>, vector<104x1xf32>,
    return
  }
  func.func @transform_0(%arg0: i32) -> (i32, i32) {
    %c0_i32 = arith.constant 0 : i32
    %c0_i32_0 = arith.constant 0 : i32
    return %arg0, %c0_i32 : i32, i32
  }
  func.func @transform_1(%arg0: i32) -> (i32, i32) {
    %c0_i32 = arith.constant 0 : i32
    %c0_i32_0 = arith.constant 0 : i32
    %c0_i32_1 = arith.constant 0 : i32
    return %c0_i32, %c0_i32_0 : i32, i32
  }
  func.func @transform_2(%arg0: i32) -> (i32, i32) {
    %c0_i32 = arith.constant 0 : i32
    %c0_i32_0 = arith.constant 0 : i32
    return %arg0, %c0_i32 : i32, i32
  }
}

</mosaic_0001>

<llo_original>
// kernel: tpu_custom_call.1
$region0: #{tpu_custom_call.1}
  #allocation0 [shape = 'u32[]', space=smem, size = 0x4, offset = 0x4, fixed_abs, tag = 'smem constant byte address 0x4 - core index']
  #allocation1 [shape = 'u32[144,128]{1,0:T(1,128)}', space=vmem, size = 0x12000, scoped, tag = 'internal scratch']
  %s0 = inlined_call_operand.vmem [shape: f32[208,24], index: 0, kind: input, shape index: {}]
  %s1 = inlined_call_operand.vmem [shape: f32[24,256], index: 1, kind: input, shape index: {}]
  %s2 = inlined_call_operand.vmem [shape: f32[208,1], index: 2, kind: output, shape index: {}]
  %s3 = sld [smem:[#allocation0]]
  $region41: #{tpu_custom_call.1} parent=0
    _
  %s5 = ssub.s32 1, %s3
  %s6 = scalar_select 0, %s5, %s3
  loop: start=0, step=1, limit=4
  $region2: #{tpu_custom_call.1} parent=0 // loop_pre_header
    _
  $region3: #{tpu_custom_call.1} parent=0 // loop_header
    %s8 = sphi 0, %s12
    %p9 = scmp.ge.s32.totalorder %s8, 4
    %s18 = sphi 0, %s20
    %s21 = sphi 0, %s18
    %s22 = sphi 0, %s21
    %s38 = sphi 0, %s22
    %s42 = sphi 0, %s42
    %s44 = sphi 0, %s42
    %s45 = sphi 0, %s44
    %s59 = sphi 0, %s45
    %s65 = sphi 0, %s67
    %s68 = sphi 0, %s65
    %s69 = sphi 0, %s68
    %s85 = sphi 0, %s69
  $region4: #{tpu_custom_call.1} parent=0 // loop_header_branch
    %11 = sbr.rel (%p9) target = $region8
  $region5: #{tpu_custom_call.1} parent=0 // loop_body
    %s13 = ssub.s32 %s8, 1
    %s14 = ssub.s32 %s8, 2
    %s15 = sadd.s32 %s8, 1
    %s16 = ssub.s32 %s8, %s15
    %p17 = scmp.eq.s32.totalorder %s16, 0
    %s19 = sadd.s32 %s18, 1
    %s20 = scalar_select %p17, %s18, %s19
    %p23 = pneg %p17
    %p24 = scmp.eq.s32.totalorder %s8, 1
    %p25 = por %p23, %p24
    %p26 = scmp.ne.s32.totalorder %s18, %s21
    %p27 = scmp.eq.s32.totalorder %s8, 0
    %p28 = por %p26, %p27
    %p29 = scmp.ne.s32.totalorder %s18, %s21
    %p30 = scmp.eq.s32.totalorder %s13, 1
    %p31 = por %p29, %p30
    %p32 = scmp.ne.s32.totalorder %s21, %s22
    %p33 = scmp.eq.s32.totalorder %s13, 0
    %p34 = por %p32, %p33
    %p35 = scmp.ne.s32.totalorder %s21, %s22
    %p36 = scmp.eq.s32.totalorder %s14, 1
    %p37 = por %p35, %p36
    %p39 = scmp.ne.s32.totalorder %s22, %s38
    %p40 = scmp.eq.s32.totalorder %s14, 0
    %p41 = por %p39, %p40
    %s43 = sadd.s32 %s42, 1
    %p46 = scmp.eq.s32.totalorder %s8, 1
    %p47 = scmp.ne.s32.totalorder %s42, %s44
    %p48 = scmp.eq.s32.totalorder %s8, 0
    %p49 = por %p47, %p48
    %p50 = scmp.ne.s32.totalorder %s42, %s44
    %p51 = scmp.eq.s32.totalorder %s13, 1
    %p52 = por %p50, %p51
    %p53 = scmp.ne.s32.totalorder %s44, %s45
    %p54 = scmp.eq.s32.totalorder %s13, 0
    %p55 = por %p53, %p54
    %p56 = scmp.ne.s32.totalorder %s44, %s45
    %p57 = scmp.eq.s32.totalorder %s14, 1
    %p58 = por %p56, %p57
    %p60 = scmp.ne.s32.totalorder %s45, %s59
    %p61 = scmp.eq.s32.totalorder %s14, 0
    %p62 = por %p60, %p61
    %s63 = ssub.s32 %s8, %s15
    %p64 = scmp.eq.s32.totalorder %s63, 0
    %s66 = sadd.s32 %s65, 1
    %s67 = scalar_select %p64, %s65, %s66
    %p70 = pneg %p64
    %p71 = scmp.eq.s32.totalorder %s8, 1
    %p72 = por %p70, %p71
    %p73 = scmp.ne.s32.totalorder %s65, %s68
    %p74 = scmp.eq.s32.totalorder %s8, 0
    %p75 = por %p73, %p74
    %p76 = scmp.ne.s32.totalorder %s65, %s68
    %p77 = scmp.eq.s32.totalorder %s13, 1
    %p78 = por %p76, %p77
    %p79 = scmp.ne.s32.totalorder %s68, %s69
    %p80 = scmp.eq.s32.totalorder %s13, 0
    %p81 = por %p79, %p80
    %p82 = scmp.ne.s32.totalorder %s68, %s69
    %p83 = scmp.eq.s32.totalorder %s14, 1
    %p84 = por %p82, %p83
    %p86 = scmp.ne.s32.totalorder %s69, %s85
    %p87 = scmp.eq.s32.totalorder %s14, 0
    %p88 = por %p86, %p87
    %p89 = scmp.le.s32.totalorder 1, %s8
    %p90 = scmp.lt.s32.totalorder %s8, 3
    %p91 = pnand %p89, %p90
    %p92 = pneg %p91
    // Predicated region
    $region9: #{tpu_custom_call.1} parent=5 // pred_check
      _
    $region10: #{tpu_custom_call.1} parent=5 // pred_check_branch
      %94 = sbr.rel (%p91) target = $region12
    $region11: #{tpu_custom_call.1} parent=5 // pred_region
      %s95 = ssub.s32 %s8, 1
      // Predicated region
      $region13: #{tpu_custom_call.1} parent=11 // pred_check
        %p96 = pneg %p55
      $region14: #{tpu_custom_call.1} parent=11 // pred_check_branch
        %98 = sbr.rel (%p96) target = $region16
      $region15: #{tpu_custom_call.1} parent=11 // pred_region
        _
      $region16: #{tpu_custom_call.1} parent=11 // pred_fallthru
        _
    $region12: #{tpu_custom_call.1} parent=5 // pred_fallthru
      _
    %p99 = scmp.lt.s32.totalorder %s8, 2
    // Predicated region
    $region17: #{tpu_custom_call.1} parent=5 // pred_check
      %p100 = pneg %p99
    $region18: #{tpu_custom_call.1} parent=5 // pred_check_branch
      %102 = sbr.rel (%p100) target = $region20
    $region19: #{tpu_custom_call.1} parent=5 // pred_region
      // Predicated region
      $region21: #{tpu_custom_call.1} parent=19 // pred_check
        %p103 = pneg %p28
      $region22: #{tpu_custom_call.1} parent=19 // pred_check_branch
        %105 = sbr.rel (%p103) target = $region24
      $region23: #{tpu_custom_call.1} parent=19 // pred_region
        %s106 = smul.u32 13, %s8
        %p107 = scmp.lt.s32.totalorder %s106, 25
        %s108 = scalar_select %p107, %s106, 25
        %s109 = smul.addr %s108, 8
        %s110 = scalar_lea.vmem %s0, %s109
        %s111 = smul.u32 13, %s8
      $region24: #{tpu_custom_call.1} parent=19 // pred_fallthru
        _
    $region20: #{tpu_custom_call.1} parent=5 // pred_fallthru
      _
    %p112 = scmp.le.s32.totalorder 1, %s8
    %p113 = scmp.lt.s32.totalorder %s8, 3
    %p114 = pnand %p112, %p113
    %p115 = pneg %p114
    // Predicated region
    $region25: #{tpu_custom_call.1} parent=5 // pred_check
      _
    $region26: #{tpu_custom_call.1} parent=5 // pred_check_branch
      %117 = sbr.rel (%p114) target = $region28
    $region27: #{tpu_custom_call.1} parent=5 // pred_region
      %s118 = ssub.s32 %s8, 1
      %s119 = smul.u32 13, %s13
      %p120 = scmp.lt.s32.totalorder %s119, 25
      %s121 = scalar_select %p120, %s119, 25
      %s122 = smul.addr %s121, 8
      %s123 = scalar_lea.vmem %s0, %s122
      %p124 = pneg %p34
      %p125 = pneg %p31
      %p126 = pneg %p55
      %p127 = pneg %p52
      %p128 = pneg %p81
      %p129 = pneg %p78
      %s130 = smul.u32 13, %s13
      %p131 = scmp.lt.s32.totalorder %s130, 25
      %s132 = scalar_select %p131, %s130, 25
      %s133 = smul.addr %s132, 8
      %s134 = scalar_lea.vmem %s2, %s133
      %s135 = smul.u32 13, %s13
      %p136 = scmp.lt.s32.totalorder %s135, 25
      %s137 = scalar_select %p136, %s135, 25
      %s138 = smul.addr %s137, 8
      %s139 = scalar_lea.vmem %s0, %s138
      %s140 = smul.u32 13, %s13
      %s141 = smul.u32 13, %s13
      %p142 = scmp.lt.s32.totalorder %s141, 25
      %s143 = scalar_select %p142, %s141, 25
      %s144 = smul.addr %s143, 8
      %s145 = scalar_lea.vmem %s2, %s144
      %s146 = smul.u32 13, %s13
      %v147 = vld [vmem:[%s139] sm:$0xff]
      %v148 = vld [vmem:[%s139 + $0x8] sm:$0xff]
      %v149 = vld [vmem:[%s139 + $0x10] sm:$0xff]
      %v150 = vld [vmem:[%s139 + $0x18] sm:$0xff]
      %v151 = vld [vmem:[%s139 + $0x20] sm:$0xff]
      %v152 = vld [vmem:[%s139 + $0x28] sm:$0xff]
      %v153 = vld [vmem:[%s139 + $0x30] sm:$0xff]
      %v154 = vld [vmem:[%s139 + $0x38] sm:$0xff]
      %v155 = vld [vmem:[%s139 + $0x40] sm:$0xff]
      %v156 = vld [vmem:[%s139 + $0x48] sm:$0xff]
      %v157 = vld [vmem:[%s139 + $0x50] sm:$0xff]
      %v158 = vld [vmem:[%s139 + $0x58] sm:$0xff]
      %v159 = vld [vmem:[%s139 + $0x60] sm:$0xff]
      %v160 = vld [vmem:[%s1] sm:$0xff]
      %v161 = vld [vmem:[%s1 + $0x8] sm:$0xff]
      %v162 = vld [vmem:[%s1 + $0x10] sm:$0xff]
      %v163 = vld [vmem:[%s1 + $0x18] sm:$0xff]
      %v164 = vld [vmem:[%s1 + $0x20] sm:$0xff]
      %v165 = vld [vmem:[%s1 + $0x28] sm:$0xff]
      %vm166 = vcmask 195584
      %v168 = vsel %vm166, %v147, 0
      %v171 = vsel %vm166, %v148, 0
      %v174 = vsel %vm166, %v149, 0
      %v177 = vsel %vm166, %v150, 0
      %v180 = vsel %vm166, %v151, 0
      %v183 = vsel %vm166, %v152, 0
      %v186 = vsel %vm166, %v153, 0
      %v189 = vsel %vm166, %v154, 0
      %v192 = vsel %vm166, %v155, 0
      %v195 = vsel %vm166, %v156, 0
      %v198 = vsel %vm166, %v157, 0
      %v201 = vsel %vm166, %v158, 0
      %v204 = vsel %vm166, %v159, 0
      %v206 = vand.u32 %v161, 4294901760
      %207 = vmatprep.subr.mxu0 %v206
      %v208 = vand.u32 %v160, 4294901760
      %209 = vmatpush1.msra.mxu0 %v208
      %v210 = vand.u32 %v163, 4294901760
      %211 = vmatprep.subr.mxu0 %v210
      %v212 = vand.u32 %v162, 4294901760
      %213 = vmatpush1.msra.mxu0 %v212
      %v214 = vand.u32 %v165, 4294901760
      %215 = vmatprep.subr.mxu0 %v214
      %v216 = vand.u32 %v164, 4294901760
      %217 = vmatpush1.msra.mxu0 %v216
      %218 = vmatprep.subr.mxu0 0.0
      %219 = vmatpush1.msra.mxu0 0.0
      %220 = vmatprep.subr.mxu0 0.0
      %221 = vmatpush1.msra.mxu0 0.0
      %222 = vmatprep.subr.mxu0 0.0
      %223 = vmatpush1.msra.mxu0 0.0
      %224 = vmatprep.subr.mxu0 0.0
      %225 = vmatpush1.msra.mxu0 0.0
      %226 = vmatprep.subr.mxu0 0.0
      %227 = vmatpush1.msra.mxu0 0.0
      %228 = vmatprep.subr.mxu0 0.0
      %229 = vmatpush1.msra.mxu0 0.0
      %230 = vmatprep.subr.mxu0 0.0
      %231 = vmatpush1.msra.mxu0 0.0
      %232 = vmatprep.subr.mxu0 0.0
      %233 = vmatpush1.msra.mxu0 0.0
      %234 = vmatprep.subr.mxu0 0.0
      %235 = vmatpush1.msra.mxu0 0.0
      %236 = vmatprep.subr.mxu0 0.0
      %237 = vmatpush1.msra.mxu0 0.0
      %238 = vmatprep.subr.mxu0 0.0
      %239 = vmatpush1.msra.mxu0 0.0
      %240 = vmatprep.subr.mxu0 0.0
      %241 = vmatpush1.msra.mxu0 0.0
      %242 = vmatprep.subr.mxu0 0.0
      %243 = vmatpush1.msra.mxu0 0.0
      %244 = vmatprep.subr.mxu0 0.0
      %245 = vmatpush1.msra.mxu0 0.0
      %246 = vmatprep.subr.mxu0 0.0
      %247 = vmatpush1.msra.mxu0 0.0
      %248 = vmatprep.subr.mxu0 0.0
      %249 = vmatpush1.msra.mxu0 0.0
      %250 = vmatprep.subr.mxu0 0.0
      %251 = vmatpush1.msra.mxu0 0.0
      %252 = vmatprep.subr.mxu0 0.0
      %253 = vmatpush1.msra.mxu0 0.0
      %254 = vmatprep.subr.mxu0 0.0
      %255 = vmatpush1.msra.mxu0 0.0
      %256 = vmatprep.subr.mxu0 0.0
      %257 = vmatpush1.msra.mxu0 0.0
      %258 = vmatprep.subr.mxu0 0.0
      %259 = vmatpush1.msra.mxu0 0.0
      %260 = vmatprep.subr.mxu0 0.0
      %261 = vmatpush1.msra.mxu0 0.0
      %262 = vmatprep.subr.mxu0 0.0
      %263 = vmatpush1.msra.mxu0 0.0
      %264 = vmatprep.subr.mxu0 0.0
      %265 = vmatpush1.msra.mxu0 0.0
      %266 = vmatprep.subr.mxu0 0.0
      %267 = vmatpush1.msra.mxu0 0.0
      %268 = vmatprep.subr.mxu0 0.0
      %269 = vmatpush1.msra.mxu0 0.0
      %270 = vmatprep.subr.mxu0 0.0
      %271 = vmatpush1.msra.mxu0 0.0
      %272 = vmatprep.subr.mxu0 0.0
      %273 = vmatpush1.msra.mxu0 0.0
      %274 = vmatprep.subr.mxu0 0.0
      %275 = vmatpush1.msra.mxu0 0.0
      %276 = vmatprep.mubr.f32.mxu0 0.0
      %v277 = vand.u32 %v168, 4294901760
      %v278 = vsub.f32 %v168, %v277
      %v279 = vand.u32 %v278, 4294901760
      %v280 = vsub.f32 %v278, %v279
      %v281 = vand.u32 %v280, 4294901760
      %282 = vmatmul.mubr.f32.gmra.mrb[0].mxu0 %v281
      %v283 = vpop.f32.mrb[0].mxu0
      %v284 = vadd.f32 0.0, %v283
      %v285 = vpop.f32.mrb[0].mxu0
      %v286 = vadd.f32 0.0, %v285
      %287 = vmatprep.mubr.f32.mxu0 0.0
      %v288 = vand.u32 %v171, 4294901760
      %v289 = vsub.f32 %v171, %v288
      %v290 = vand.u32 %v289, 4294901760
      %v291 = vsub.f32 %v289, %v290
      %v292 = vand.u32 %v291, 4294901760
      %293 = vmatmul.mubr.f32.gmra.mrb[0].mxu0 %v292
      %v294 = vpop.f32.mrb[0].mxu0
      %v295 = vadd.f32 0.0, %v294
      %v296 = vpop.f32.mrb[0].mxu0
      %v297 = vadd.f32 0.0, %v296
      %298 = vmatprep.mubr.f32.mxu0 0.0
      %v299 = vand.u32 %v174, 4294901760
      %v300 = vsub.f32 %v174, %v299
      %v301 = vand.u32 %v300, 4294901760
      %v302 = vsub.f32 %v300, %v301
      %v303 = vand.u32 %v302, 4294901760
      %304 = vmatmul.mubr.f32.gmra.mrb[0].mxu0 %v303
      %v305 = vpop.f32.mrb[0].mxu0
      %v306 = vadd.f32 0.0, %v305
      %v307 = vpop.f32.mrb[0].mxu0
      %v308 = vadd.f32 0.0, %v307
      %309 = vmatprep.mubr.f32.mxu0 0.0
      %v310 = vand.u32 %v177, 4294901760
      %v311 = vsub.f32 %v177, %v310
      %v312 = vand.u32 %v311, 4294901760
      %v313 = vsub.f32 %v311, %v312
      %v314 = vand.u32 %v313, 4294901760
      %315 = vmatmul.mubr.f32.gmra.mrb[0].mxu0 %v314
      %v316 = vpop.f32.mrb[0].mxu0
      %v317 = vadd.f32 0.0, %v316
      %v318 = vpop.f32.mrb[0].mxu0
      %v319 = vadd.f32 0.0, %v318
      %320 = vmatprep.mubr.f32.mxu0 0.0
      %v321 = vand.u32 %v180, 4294901760
      %v322 = vsub.f32 %v180, %v321
      %v323 = vand.u32 %v322, 4294901760
      %v324 = vsub.f32 %v322, %v323
      %v325 = vand.u32 %v324, 4294901760
      %326 = vmatmul.mubr.f32.gmra.mrb[0].mxu0 %v325
      %v327 = vpop.f32.mrb[0].mxu0
      %v328 = vadd.f32 0.0, %v327
      %v329 = vpop.f32.mrb[0].mxu0
      %v330 = vadd.f32 0.0, %v329
      %331 = vmatprep.mubr.f32.mxu0 0.0
      %v332 = vand.u32 %v183, 4294901760
      %v333 = vsub.f32 %v183, %v332
      %v334 = vand.u32 %v333, 4294901760
      %v335 = vsub.f32 %v333, %v334
      %v336 = vand.u32 %v335, 4294901760
      %337 = vmatmul.mubr.f32.gmra.mrb[0].mxu0 %v336
      %v338 = vpop.f32.mrb[0].mxu0
      %v339 = vadd.f32 0.0, %v338
      %v340 = vpop.f32.mrb[0].mxu0
      %v341 = vadd.f32 0.0, %v340
      %342 = vmatprep.mubr.f32.mxu0 0.0
      %v343 = vand.u32 %v186, 4294901760
      %v344 = vsub.f32 %v186, %v343
      %v345 = vand.u32 %v344, 4294901760
      %v346 = vsub.f32 %v344, %v345
      %v347 = vand.u32 %v346, 4294901760
      %348 = vmatmul.mubr.f32.gmra.mrb[0].mxu0 %v347
      %v349 = vpop.f32.mrb[0].mxu0
      %v350 = vadd.f32 0.0, %v349
      %v351 = vpop.f32.mrb[0].mxu0
      %v352 = vadd.f32 0.0, %v351
      %353 = vmatprep.mubr.f32.mxu0 0.0
      %v354 = vand.u32 %v189, 4294901760
      %v355 = vsub.f32 %v189, %v354
      %v356 = vand.u32 %v355, 4294901760
      %v357 = vsub.f32 %v355, %v356
      %v358 = vand.u32 %v357, 4294901760
      %359 = vmatmul.mubr.f32.gmra.mrb[0].mxu0 %v358
      %v360 = vpop.f32.mrb[0].mxu0
      %v361 = vadd.f32 0.0, %v360
      %v362 = vpop.f32.mrb[0].mxu0
      %v363 = vadd.f32 0.0, %v362
      %364 = vmatprep.mubr.f32.mxu0 0.0
      %v365 = vand.u32 %v192, 4294901760
      %v366 = vsub.f32 %v192, %v365
      %v367 = vand.u32 %v366, 4294901760
      %v368 = vsub.f32 %v366, %v367
      %v369 = vand.u32 %v368, 4294901760
      %370 = vmatmul.mubr.f32.gmra.mrb[0].mxu0 %v369
      %v371 = vpop.f32.mrb[0].mxu0
      %v372 = vadd.f32 0.0, %v371
      %v373 = vpop.f32.mrb[0].mxu0
      %v374 = vadd.f32 0.0, %v373
      %375 = vmatprep.mubr.f32.mxu0 0.0
      %v376 = vand.u32 %v195, 4294901760
      %v377 = vsub.f32 %v195, %v376
      %v378 = vand.u32 %v377, 4294901760
      %v379 = vsub.f32 %v377, %v378
      %v380 = vand.u32 %v379, 4294901760
      %381 = vmatmul.mubr.f32.gmra.mrb[0].mxu0 %v380
      %v382 = vpop.f32.mrb[0].mxu0
      %v383 = vadd.f32 0.0, %v382
      %v384 = vpop.f32.mrb[0].mxu0
      %v385 = vadd.f32 0.0, %v384
      %386 = vmatprep.mubr.f32.mxu0 0.0
      %v387 = vand.u32 %v198, 4294901760
      %v388 = vsub.f32 %v198, %v387
      %v389 = vand.u32 %v388, 4294901760
      %v390 = vsub.f32 %v388, %v389
      %v391 = vand.u32 %v390, 4294901760
      %392 = vmatmul.mubr.f32.gmra.mrb[0].mxu0 %v391
      %v393 = vpop.f32.mrb[0].mxu0
      %v394 = vadd.f32 0.0, %v393
      %v395 = vpop.f32.mrb[0].mxu0
      %v396 = vadd.f32 0.0, %v395
      %397 = vmatprep.mubr.f32.mxu0 0.0
      %v398 = vand.u32 %v201, 4294901760
      %v399 = vsub.f32 %v201, %v398
      %v400 = vand.u32 %v399, 4294901760
      %v401 = vsub.f32 %v399, %v400
      %v402 = vand.u32 %v401, 4294901760
      %403 = vmatmul.mubr.f32.gmra.mrb[0].mxu0 %v402
      %v404 = vpop.f32.mrb[0].mxu0
      %v405 = vadd.f32 0.0, %v404
      %v406 = vpop.f32.mrb[0].mxu0
      %v407 = vadd.f32 0.0, %v406
      %408 = vmatprep.mubr.f32.mxu0 0.0
      %v409 = vand.u32 %v204, 4294901760
      %v410 = vsub.f32 %v204, %v409
      %v411 = vand.u32 %v410, 4294901760
      %v412 = vsub.f32 %v410, %v411
      %v413 = vand.u32 %v412, 4294901760
      %414 = vmatmul.mubr.f32.gmra.mrb[0].mxu0 %v413
      %v415 = vpop.f32.mrb[0].mxu0
      %v416 = vadd.f32 0.0, %v415
      %v417 = vpop.f32.mrb[0].mxu0
      %v418 = vadd.f32 0.0, %v417
      %419 = vdwg.mxu0
      %v420 = vand.u32 %v161, 4294901760
      %v421 = vsub.f32 %v161, %v420
      %v422 = vand.u32 %v421, 4294901760
      %v423 = vsub.f32 %v421, %v422
      %v424 = vand.u32 %v423, 4294901760
      %425 = vmatprep.subr.mxu0 %v424
      %v426 = vand.u32 %v160, 4294901760
      %v427 = vsub.f32 %v160, %v426
      %v428 = vand.u32 %v427, 4294901760
      %v429 = vsub.f32 %v427, %v428
      %v430 = vand.u32 %v429, 4294901760
      %431 = vmatpush1.msra.mxu0 %v430
      %v432 = vand.u32 %v163, 4294901760
      %v433 = vsub.f32 %v163, %v432
      %v434 = vand.u32 %v433, 4294901760
      %v435 = vsub.f32 %v433, %v434
      %v436 = vand.u32 %v435, 4294901760
      %437 = vmatprep.subr.mxu0 %v436
      %v438 = vand.u32 %v162, 4294901760
      %v439 = vsub.f32 %v162, %v438
      %v440 = vand.u32 %v439, 4294901760
      %v441 = vsub.f32 %v439, %v440
      %v442 = vand.u32 %v441, 4294901760
      %443 = vmatpush1.msra.mxu0 %v442
      %v444 = vand.u32 %v165, 4294901760
      %v445 = vsub.f32 %v165, %v444
      %v446 = vand.u32 %v445, 4294901760
      %v447 = vsub.f32 %v445, %v446
      %v448 = vand.u32 %v447, 4294901760
      %449 = vmatprep.subr.mxu0 %v448
      %v450 = vand.u32 %v164, 4294901760
      %v451 = vsub.f32 %v164, %v450
      %v452 = vand.u32 %v451, 4294901760
      %v453 = vsub.f32 %v451, %v452
      %v454 = vand.u32 %v453, 4294901760
      %455 = vmatpush1.msra.mxu0 %v454
      %456 = vmatprep.subr.mxu0 0.0
      %457 = vmatpush1.msra.mxu0 0.0
      %458 = vmatprep.subr.mxu0 0.0
      %459 = vmatpush1.msra.mxu0 0.0
      %460 = vmatprep.subr.mxu0 0.0
      %461 = vmatpush1.msra.mxu0 0.0
      %462 = vmatprep.subr.mxu0 0.0
      %463 = vmatpush1.msra.mxu0 0.0
      %464 = vmatprep.subr.mxu0 0.0
      %465 = vmatpush1.msra.mxu0 0.0
      %466 = vmatprep.subr.mxu0 0.0
      %467 = vmatpush1.msra.mxu0 0.0
      %468 = vmatprep.subr.mxu0 0.0
      %469 = vmatpush1.msra.mxu0 0.0
      %470 = vmatprep.subr.mxu0 0.0
      %471 = vmatpush1.msra.mxu0 0.0
      %472 = vmatprep.subr.mxu0 0.0
      %473 = vmatpush1.msra.mxu0 0.0
      %474 = vmatprep.subr.mxu0 0.0
      %475 = vmatpush1.msra.mxu0 0.0
      %476 = vmatprep.subr.mxu0 0.0
      %477 = vmatpush1.msra.mxu0 0.0
      %478 = vmatprep.subr.mxu0 0.0
      %479 = vmatpush1.msra.mxu0 0.0
      %480 = vmatprep.subr.mxu0 0.0
      %481 = vmatpush1.msra.mxu0 0.0
      %482 = vmatprep.subr.mxu0 0.0
      %483 = vmatpush1.msra.mxu0 0.0
      %484 = vmatprep.subr.mxu0 0.0
      %485 = vmatpush1.msra.mxu0 0.0
      %486 = vmatprep.subr.mxu0 0.0
      %487 = vmatpush1.msra.mxu0 0.0
      %488 = vmatprep.subr.mxu0 0.0
      %489 = vmatpush1.msra.mxu0 0.0
      %490 = vmatprep.subr.mxu0 0.0
      %491 = vmatpush1.msra.mxu0 0.0
      %492 = vmatprep.subr.mxu0 0.0
      %493 = vmatpush1.msra.mxu0 0.0
      %494 = vmatprep.subr.mxu0 0.0
      %495 = vmatpush1.msra.mxu0 0.0
      %496 = vmatprep.subr.mxu0 0.0
      %497 = vmatpush1.msra.mxu0 0.0
      %498 = vmatprep.subr.mxu0 0.0
      %499 = vmatpush1.msra.mxu0 0.0
      %500 = vmatprep.subr.mxu0 0.0
      %501 = vmatpush1.msra.mxu0 0.0
      %502 = vmatprep.subr.mxu0 0.0
      %503 = vmatpush1.msra.mxu0 0.0
      %504 = vmatprep.subr.mxu0 0.0
      %505 = vmatpush1.msra.mxu0 0.0
      %506 = vmatprep.subr.mxu0 0.0
      %507 = vmatpush1.msra.mxu0 0.0
      %508 = vmatprep.subr.mxu0 0.0
      %509 = vmatpush1.msra.mxu0 0.0
      %510 = vmatprep.subr.mxu0 0.0
      %511 = vmatpush1.msra.mxu0 0.0
      %512 = vmatprep.subr.mxu0 0.0
      %513 = vmatpush1.msra.mxu0 0.0
      %514 = vmatprep.mubr.f32.mxu0 0.0
      %v515 = vand.u32 %v168, 4294901760
      %516 = vmatmul.mubr.f32.gmra.mrb[0].mxu0 %v515
      %v517 = vpop.f32.mrb[0].mxu0
      %v518 = vadd.f32 %v284, %v517
      %v519 = vpop.f32.mrb[0].mxu0
      %v520 = vadd.f32 %v286, %v519
      %521 = vmatprep.mubr.f32.mxu0 0.0
      %v522 = vand.u32 %v171, 4294901760
      %523 = vmatmul.mubr.f32.gmra.mrb[0].mxu0 %v522
      %v524 = vpop.f32.mrb[0].mxu0
      %v525 = vadd.f32 %v295, %v524
      %v526 = vpop.f32.mrb[0].mxu0
      %v527 = vadd.f32 %v297, %v526
      %528 = vmatprep.mubr.f32.mxu0 0.0
      %v529 = vand.u32 %v174, 4294901760
      %530 = vmatmul.mubr.f32.gmra.mrb[0].mxu0 %v529
      %v531 = vpop.f32.mrb[0].mxu0
      %v532 = vadd.f32 %v306, %v531
      %v533 = vpop.f32.mrb[0].mxu0
      %v534 = vadd.f32 %v308, %v533
      %535 = vmatprep.mubr.f32.mxu0 0.0
      %v536 = vand.u32 %v177, 4294901760
      %537 = vmatmul.mubr.f32.gmra.mrb[0].mxu0 %v536
      %v538 = vpop.f32.mrb[0].mxu0
      %v539 = vadd.f32 %v317, %v538
      %v540 = vpop.f32.mrb[0].mxu0
      %v541 = vadd.f32 %v319, %v540
      %542 = vmatprep.mubr.f32.mxu0 0.0
      %v543 = vand.u32 %v180, 4294901760
      %544 = vmatmul.mubr.f32.gmra.mrb[0].mxu0 %v543
      %v545 = vpop.f32.mrb[0].mxu0
      %v546 = vadd.f32 %v328, %v545
      %v547 = vpop.f32.mrb[0].mxu0
      %v548 = vadd.f32 %v330, %v547
      %549 = vmatprep.mubr.f32.mxu0 0.0
      %v550 = vand.u32 %v183, 4294901760
      %551 = vmatmul.mubr.f32.gmra.mrb[0].mxu0 %v550
      %v552 = vpop.f32.mrb[0].mxu0
      %v553 = vadd.f32 %v339, %v552
      %v554 = vpop.f32.mrb[0].mxu0
      %v555 = vadd.f32 %v341, %v554
      %556 = vmatprep.mubr.f32.mxu0 0.0
      %v557 = vand.u32 %v186, 4294901760
      %558 = vmatmul.mubr.f32.gmra.mrb[0].mxu0 %v557
      %v559 = vpop.f32.mrb[0].mxu0
      %v560 = vadd.f32 %v350, %v559
      %v561 = vpop.f32.mrb[0].mxu0
      %v562 = vadd.f32 %v352, %v561
      %563 = vmatprep.mubr.f32.mxu0 0.0
      %v564 = vand.u32 %v189, 4294901760
      %565 = vmatmul.mubr.f32.gmra.mrb[0].mxu0 %v564
      %v566 = vpop.f32.mrb[0].mxu0
      %v567 = vadd.f32 %v361, %v566
      %v568 = vpop.f32.mrb[0].mxu0
      %v569 = vadd.f32 %v363, %v568
      %570 = vmatprep.mubr.f32.mxu0 0.0
      %v571 = vand.u32 %v192, 4294901760
      %572 = vmatmul.mubr.f32.gmra.mrb[0].mxu0 %v571
      %v573 = vpop.f32.mrb[0].mxu0
      %v574 = vadd.f32 %v372, %v573
      %v575 = vpop.f32.mrb[0].mxu0
      %v576 = vadd.f32 %v374, %v575
      %577 = vmatprep.mubr.f32.mxu0 0.0
      %v578 = vand.u32 %v195, 4294901760
      %579 = vmatmul.mubr.f32.gmra.mrb[0].mxu0 %v578
      %v580 = vpop.f32.mrb[0].mxu0
      %v581 = vadd.f32 %v383, %v580
      %v582 = vpop.f32.mrb[0].mxu0
      %v583 = vadd.f32 %v385, %v582
      %584 = vmatprep.mubr.f32.mxu0 0.0
      %v585 = vand.u32 %v198, 4294901760
      %586 = vmatmul.mubr.f32.gmra.mrb[0].mxu0 %v585
      %v587 = vpop.f32.mrb[0].mxu0
      %v588 = vadd.f32 %v394, %v587
      %v589 = vpop.f32.mrb[0].mxu0
      %v590 = vadd.f32 %v396, %v589
      %591 = vmatprep.mubr.f32.mxu0 0.0
      %v592 = vand.u32 %v201, 4294901760
      %593 = vmatmul.mubr.f32.gmra.mrb[0].mxu0 %v592
      %v594 = vpop.f32.mrb[0].mxu0
      %v595 = vadd.f32 %v405, %v594
      %v596 = vpop.f32.mrb[0].mxu0
      %v597 = vadd.f32 %v407, %v596
      %598 = vmatprep.mubr.f32.mxu0 0.0
      %v599 = vand.u32 %v204, 4294901760
      %600 = vmatmul.mubr.f32.gmra.mrb[0].mxu0 %v599
      %v601 = vpop.f32.mrb[0].mxu0
      %v602 = vadd.f32 %v416, %v601
      %v603 = vpop.f32.mrb[0].mxu0
      %v604 = vadd.f32 %v418, %v603
      %605 = vdwg.mxu0
      %v606 = vand.u32 %v161, 4294901760
      %v607 = vsub.f32 %v161, %v606
      %608 = vmatprep.subr.mxu0 %v607
      %v609 = vand.u32 %v160, 4294901760
      %v610 = vsub.f32 %v160, %v609
      %611 = vmatpush1.msra.mxu0 %v610
      %v612 = vand.u32 %v163, 4294901760
      %v613 = vsub.f32 %v163, %v612
      %614 = vmatprep.subr.mxu0 %v613
      %v615 = vand.u32 %v162, 4294901760
      %v616 = vsub.f32 %v162, %v615
      %617 = vmatpush1.msra.mxu0 %v616
      %v618 = vand.u32 %v165, 4294901760
      %v619 = vsub.f32 %v165, %v618
      %620 = vmatprep.subr.mxu0 %v619
      %v621 = vand.u32 %v164, 4294901760
      %v622 = vsub.f32 %v164, %v621
      %623 = vmatpush1.msra.mxu0 %v622
      %624 = vmatprep.subr.mxu0 0.0
      %625 = vmatpush1.msra.mxu0 0.0
      %626 = vmatprep.subr.mxu0 0.0
      %627 = vmatpush1.msra.mxu0 0.0
      %628 = vmatprep.subr.mxu0 0.0
      %629 = vmatpush1.msra.mxu0 0.0
      %630 = vmatprep.subr.mxu0 0.0
      %631 = vmatpush1.msra.mxu0 0.0
      %632 = vmatprep.subr.mxu0 0.0
      %633 = vmatpush1.msra.mxu0 0.0
      %634 = vmatprep.subr.mxu0 0.0
      %635 = vmatpush1.msra.mxu0 0.0
      %636 = vmatprep.subr.mxu0 0.0
      %637 = vmatpush1.msra.mxu0 0.0
      %638 = vmatprep.subr.mxu0 0.0
      %639 = vmatpush1.msra.mxu0 0.0
      %640 = vmatprep.subr.mxu0 0.0
      %641 = vmatpush1.msra.mxu0 0.0
      %642 = vmatprep.subr.mxu0 0.0
      %643 = vmatpush1.msra.mxu0 0.0
      %644 = vmatprep.subr.mxu0 0.0
      %645 = vmatpush1.msra.mxu0 0.0
      %646 = vmatprep.subr.mxu0 0.0
      %647 = vmatpush1.msra.mxu0 0.0
      %648 = vmatprep.subr.mxu0 0.0
      %649 = vmatpush1.msra.mxu0 0.0
      %650 = vmatprep.subr.mxu0 0.0
      %651 = vmatpush1.msra.mxu0 0.0
      %652 = vmatprep.subr.mxu0 0.0
      %653 = vmatpush1.msra.mxu0 0.0
      %654 = vmatprep.subr.mxu0 0.0
      %655 = vmatpush1.msra.mxu0 0.0
      %656 = vmatprep.subr.mxu0 0.0
      %657 = vmatpush1.msra.mxu0 0.0
      %658 = vmatprep.subr.mxu0 0.0
      %659 = vmatpush1.msra.mxu0 0.0
      %660 = vmatprep.subr.mxu0 0.0
      %661 = vmatpush1.msra.mxu0 0.0
      %662 = vmatprep.subr.mxu0 0.0
      %663 = vmatpush1.msra.mxu0 0.0
      %664 = vmatprep.subr.mxu0 0.0
      %665 = vmatpush1.msra.mxu0 0.0
      %666 = vmatprep.subr.mxu0 0.0
      %667 = vmatpush1.msra.mxu0 0.0
      %668 = vmatprep.subr.mxu0 0.0
      %669 = vmatpush1.msra.mxu0 0.0
      %670 = vmatprep.subr.mxu0 0.0
      %671 = vmatpush1.msra.mxu0 0.0
      %672 = vmatprep.subr.mxu0 0.0
      %673 = vmatpush1.msra.mxu0 0.0
      %674 = vmatprep.subr.mxu0 0.0
      %675 = vmatpush1.msra.mxu0 0.0
      %676 = vmatprep.subr.mxu0 0.0
      %677 = vmatpush1.msra.mxu0 0.0
      %678 = vmatprep.subr.mxu0 0.0
      %679 = vmatpush1.msra.mxu0 0.0
      %680 = vmatprep.subr.mxu0 0.0
      %681 = vmatpush1.msra.mxu0 0.0
      %682 = vmatprep.mubr.f32.mxu0 0.0
      %v683 = vand.u32 %v168, 4294901760
      %v684 = vsub.f32 %v168, %v683
      %685 = vmatmul.mubr.f32.gmra.mrb[0].mxu0 %v684
      %v686 = vpop.f32.mrb[0].mxu0
      %v687 = vadd.f32 %v518, %v686
      %v688 = vpop.f32.mrb[0].mxu0
      %v689 = vadd.f32 %v520, %v688
      %690 = vmatprep.mubr.f32.mxu0 0.0
      %v691 = vand.u32 %v171, 4294901760
      %v692 = vsub.f32 %v171, %v691
      %693 = vmatmul.mubr.f32.gmra.mrb[0].mxu0 %v692
      %v694 = vpop.f32.mrb[0].mxu0
      %v695 = vadd.f32 %v525, %v694
      %v696 = vpop.f32.mrb[0].mxu0
      %v697 = vadd.f32 %v527, %v696
      %698 = vmatprep.mubr.f32.mxu0 0.0
      %v699 = vand.u32 %v174, 4294901760
      %v700 = vsub.f32 %v174, %v699
      %701 = vmatmul.mubr.f32.gmra.mrb[0].mxu0 %v700
      %v702 = vpop.f32.mrb[0].mxu0
      %v703 = vadd.f32 %v532, %v702
      %v704 = vpop.f32.mrb[0].mxu0
      %v705 = vadd.f32 %v534, %v704
      %706 = vmatprep.mubr.f32.mxu0 0.0
      %v707 = vand.u32 %v177, 4294901760
      %v708 = vsub.f32 %v177, %v707
      %709 = vmatmul.mubr.f32.gmra.mrb[0].mxu0 %v708
      %v710 = vpop.f32.mrb[0].mxu0
      %v711 = vadd.f32 %v539, %v710
      %v712 = vpop.f32.mrb[0].mxu0
      %v713 = vadd.f32 %v541, %v712
      %714 = vmatprep.mubr.f32.mxu0 0.0
      %v715 = vand.u32 %v180, 4294901760
      %v716 = vsub.f32 %v180, %v715
      %717 = vmatmul.mubr.f32.gmra.mrb[0].mxu0 %v716
      %v718 = vpop.f32.mrb[0].mxu0
      %v719 = vadd.f32 %v546, %v718
      %v720 = vpop.f32.mrb[0].mxu0
      %v721 = vadd.f32 %v548, %v720
      %722 = vmatprep.mubr.f32.mxu0 0.0
      %v723 = vand.u32 %v183, 4294901760
      %v724 = vsub.f32 %v183, %v723
      %725 = vmatmul.mubr.f32.gmra.mrb[0].mxu0 %v724
      %v726 = vpop.f32.mrb[0].mxu0
      %v727 = vadd.f32 %v553, %v726
      %v728 = vpop.f32.mrb[0].mxu0
      %v729 = vadd.f32 %v555, %v728
      %730 = vmatprep.mubr.f32.mxu0 0.0
      %v731 = vand.u32 %v186, 4294901760
      %v732 = vsub.f32 %v186, %v731
      %733 = vmatmul.mubr.f32.gmra.mrb[0].mxu0 %v732
      %v734 = vpop.f32.mrb[0].mxu0
      %v735 = vadd.f32 %v560, %v734
      %v736 = vpop.f32.mrb[0].mxu0
      %v737 = vadd.f32 %v562, %v736
      %738 = vmatprep.mubr.f32.mxu0 0.0
      %v739 = vand.u32 %v189, 4294901760
      %v740 = vsub.f32 %v189, %v739
      %741 = vmatmul.mubr.f32.gmra.mrb[0].mxu0 %v740
      %v742 = vpop.f32.mrb[0].mxu0
      %v743 = vadd.f32 %v567, %v742
      %v744 = vpop.f32.mrb[0].mxu0
      %v745 = vadd.f32 %v569, %v744
      %746 = vmatprep.mubr.f32.mxu0 0.0
      %v747 = vand.u32 %v192, 4294901760
      %v748 = vsub.f32 %v192, %v747
      %749 = vmatmul.mubr.f32.gmra.mrb[0].mxu0 %v748
      %v750 = vpop.f32.mrb[0].mxu0
      %v751 = vadd.f32 %v574, %v750
      %v752 = vpop.f32.mrb[0].mxu0
      %v753 = vadd.f32 %v576, %v752
      %754 = vmatprep.mubr.f32.mxu0 0.0
      %v755 = vand.u32 %v195, 4294901760
      %v756 = vsub.f32 %v195, %v755
      %757 = vmatmul.mubr.f32.gmra.mrb[0].mxu0 %v756
      %v758 = vpop.f32.mrb[0].mxu0
      %v759 = vadd.f32 %v581, %v758
      %v760 = vpop.f32.mrb[0].mxu0
      %v761 = vadd.f32 %v583, %v760
      %762 = vmatprep.mubr.f32.mxu0 0.0
      %v763 = vand.u32 %v198, 4294901760
      %v764 = vsub.f32 %v198, %v763
      %765 = vmatmul.mubr.f32.gmra.mrb[0].mxu0 %v764
      %v766 = vpop.f32.mrb[0].mxu0
      %v767 = vadd.f32 %v588, %v766
      %v768 = vpop.f32.mrb[0].mxu0
      %v769 = vadd.f32 %v590, %v768
      %770 = vmatprep.mubr.f32.mxu0 0.0
      %v771 = vand.u32 %v201, 4294901760
      %v772 = vsub.f32 %v201, %v771
      %773 = vmatmul.mubr.f32.gmra.mrb[0].mxu0 %v772
      %v774 = vpop.f32.mrb[0].mxu0
      %v775 = vadd.f32 %v595, %v774
      %v776 = vpop.f32.mrb[0].mxu0
      %v777 = vadd.f32 %v597, %v776
      %778 = vmatprep.mubr.f32.mxu0 0.0
      %v779 = vand.u32 %v204, 4294901760
      %v780 = vsub.f32 %v204, %v779
      %781 = vmatmul.mubr.f32.gmra.mrb[0].mxu0 %v780
      %v782 = vpop.f32.mrb[0].mxu0
      %v783 = vadd.f32 %v602, %v782
      %v784 = vpop.f32.mrb[0].mxu0
      %v785 = vadd.f32 %v604, %v784
      %786 = vdwg.mxu0
      %v787 = vand.u32 %v161, 4294901760
      %788 = vmatprep.subr.mxu0 %v787
      %v789 = vand.u32 %v160, 4294901760
      %790 = vmatpush1.msra.mxu0 %v789
      %v791 = vand.u32 %v163, 4294901760
      %792 = vmatprep.subr.mxu0 %v791
      %v793 = vand.u32 %v162, 4294901760
      %794 = vmatpush1.msra.mxu0 %v793
      %v795 = vand.u32 %v165, 4294901760
      %796 = vmatprep.subr.mxu0 %v795
      %v797 = vand.u32 %v164, 4294901760
      %798 = vmatpush1.msra.mxu0 %v797
      %799 = vmatprep.subr.mxu0 0.0
      %800 = vmatpush1.msra.mxu0 0.0
      %801 = vmatprep.subr.mxu0 0.0
      %802 = vmatpush1.msra.mxu0 0.0
      %803 = vmatprep.subr.mxu0 0.0
      %804 = vmatpush1.msra.mxu0 0.0
      %805 = vmatprep.subr.mxu0 0.0
      %806 = vmatpush1.msra.mxu0 0.0
      %807 = vmatprep.subr.mxu0 0.0
      %808 = vmatpush1.msra.mxu0 0.0
      %809 = vmatprep.subr.mxu0 0.0
      %810 = vmatpush1.msra.mxu0 0.0
      %811 = vmatprep.subr.mxu0 0.0
      %812 = vmatpush1.msra.mxu0 0.0
      %813 = vmatprep.subr.mxu0 0.0
      %814 = vmatpush1.msra.mxu0 0.0
      %815 = vmatprep.subr.mxu0 0.0
      %816 = vmatpush1.msra.mxu0 0.0
      %817 = vmatprep.subr.mxu0 0.0
      %818 = vmatpush1.msra.mxu0 0.0
      %819 = vmatprep.subr.mxu0 0.0
      %820 = vmatpush1.msra.mxu0 0.0
      %821 = vmatprep.subr.mxu0 0.0
      %822 = vmatpush1.msra.mxu0 0.0
      %823 = vmatprep.subr.mxu0 0.0
      %824 = vmatpush1.msra.mxu0 0.0
      %825 = vmatprep.subr.mxu0 0.0
      %826 = vmatpush1.msra.mxu0 0.0
      %827 = vmatprep.subr.mxu0 0.0
      %828 = vmatpush1.msra.mxu0 0.0
      %829 = vmatprep.subr.mxu0 0.0
      %830 = vmatpush1.msra.mxu0 0.0
      %831 = vmatprep.subr.mxu0 0.0
      %832 = vmatpush1.msra.mxu0 0.0
      %833 = vmatprep.subr.mxu0 0.0
      %834 = vmatpush1.msra.mxu0 0.0
      %835 = vmatprep.subr.mxu0 0.0
      %836 = vmatpush1.msra.mxu0 0.0
      %837 = vmatprep.subr.mxu0 0.0
      %838 = vmatpush1.msra.mxu0 0.0
      %839 = vmatprep.subr.mxu0 0.0
      %840 = vmatpush1.msra.mxu0 0.0
      %841 = vmatprep.subr.mxu0 0.0
      %842 = vmatpush1.msra.mxu0 0.0
      %843 = vmatprep.subr.mxu0 0.0
      %844 = vmatpush1.msra.mxu0 0.0
      %845 = vmatprep.subr.mxu0 0.0
      %846 = vmatpush1.msra.mxu0 0.0
      %847 = vmatprep.subr.mxu0 0.0
      %848 = vmatpush1.msra.mxu0 0.0
      %849 = vmatprep.subr.mxu0 0.0
      %850 = vmatpush1.msra.mxu0 0.0
      %851 = vmatprep.subr.mxu0 0.0
      %852 = vmatpush1.msra.mxu0 0.0
      %853 = vmatprep.subr.mxu0 0.0
      %854 = vmatpush1.msra.mxu0 0.0
      %855 = vmatprep.subr.mxu0 0.0
      %856 = vmatpush1.msra.mxu0 0.0
      %857 = vmatprep.mubr.f32.mxu0 0.0
      %v858 = vand.u32 %v168, 4294901760
      %v859 = vsub.f32 %v168, %v858
      %v860 = vand.u32 %v859, 4294901760
      %861 = vmatmul.mubr.f32.gmra.mrb[0].mxu0 %v860
      %v862 = vpop.f32.mrb[0].mxu0
      %v863 = vadd.f32 %v687, %v862
      %v864 = vpop.f32.mrb[0].mxu0
      %v865 = vadd.f32 %v689, %v864
      %866 = vmatprep.mubr.f32.mxu0 0.0
      %v867 = vand.u32 %v171, 4294901760
      %v868 = vsub.f32 %v171, %v867
      %v869 = vand.u32 %v868, 4294901760
      %870 = vmatmul.mubr.f32.gmra.mrb[0].mxu0 %v869
      %v871 = vpop.f32.mrb[0].mxu0
      %v872 = vadd.f32 %v695, %v871
      %v873 = vpop.f32.mrb[0].mxu0
      %v874 = vadd.f32 %v697, %v873
      %875 = vmatprep.mubr.f32.mxu0 0.0
      %v876 = vand.u32 %v174, 4294901760
      %v877 = vsub.f32 %v174, %v876
      %v878 = vand.u32 %v877, 4294901760
      %879 = vmatmul.mubr.f32.gmra.mrb[0].mxu0 %v878
      %v880 = vpop.f32.mrb[0].mxu0
      %v881 = vadd.f32 %v703, %v880
      %v882 = vpop.f32.mrb[0].mxu0
      %v883 = vadd.f32 %v705, %v882
      %884 = vmatprep.mubr.f32.mxu0 0.0
      %v885 = vand.u32 %v177, 4294901760
      %v886 = vsub.f32 %v177, %v885
      %v887 = vand.u32 %v886, 4294901760
      %888 = vmatmul.mubr.f32.gmra.mrb[0].mxu0 %v887
      %v889 = vpop.f32.mrb[0].mxu0
      %v890 = vadd.f32 %v711, %v889
      %v891 = vpop.f32.mrb[0].mxu0
      %v892 = vadd.f32 %v713, %v891
      %893 = vmatprep.mubr.f32.mxu0 0.0
      %v894 = vand.u32 %v180, 4294901760
      %v895 = vsub.f32 %v180, %v894
      %v896 = vand.u32 %v895, 4294901760
      %897 = vmatmul.mubr.f32.gmra.mrb[0].mxu0 %v896
      %v898 = vpop.f32.mrb[0].mxu0
      %v899 = vadd.f32 %v719, %v898
      %v900 = vpop.f32.mrb[0].mxu0
      %v901 = vadd.f32 %v721, %v900
      %902 = vmatprep.mubr.f32.mxu0 0.0
      %v903 = vand.u32 %v183, 4294901760
      %v904 = vsub.f32 %v183, %v903
      %v905 = vand.u32 %v904, 4294901760
      %906 = vmatmul.mubr.f32.gmra.mrb[0].mxu0 %v905
      %v907 = vpop.f32.mrb[0].mxu0
      %v908 = vadd.f32 %v727, %v907
      %v909 = vpop.f32.mrb[0].mxu0
      %v910 = vadd.f32 %v729, %v909
      %911 = vmatprep.mubr.f32.mxu0 0.0
      %v912 = vand.u32 %v186, 4294901760
      %v913 = vsub.f32 %v186, %v912
      %v914 = vand.u32 %v913, 4294901760
      %915 = vmatmul.mubr.f32.gmra.mrb[0].mxu0 %v914
      %v916 = vpop.f32.mrb[0].mxu0
      %v917 = vadd.f32 %v735, %v916
      %v918 = vpop.f32.mrb[0].mxu0
      %v919 = vadd.f32 %v737, %v918
      %920 = vmatprep.mubr.f32.mxu0 0.0
      %v921 = vand.u32 %v189, 4294901760
      %v922 = vsub.f32 %v189, %v921
      %v923 = vand.u32 %v922, 4294901760
      %924 = vmatmul.mubr.f32.gmra.mrb[0].mxu0 %v923
      %v925 = vpop.f32.mrb[0].mxu0
      %v926 = vadd.f32 %v743, %v925
      %v927 = vpop.f32.mrb[0].mxu0
      %v928 = vadd.f32 %v745, %v927
      %929 = vmatprep.mubr.f32.mxu0 0.0
      %v930 = vand.u32 %v192, 4294901760
      %v931 = vsub.f32 %v192, %v930
      %v932 = vand.u32 %v931, 4294901760
      %933 = vmatmul.mubr.f32.gmra.mrb[0].mxu0 %v932
      %v934 = vpop.f32.mrb[0].mxu0
      %v935 = vadd.f32 %v751, %v934
      %v936 = vpop.f32.mrb[0].mxu0
      %v937 = vadd.f32 %v753, %v936
      %938 = vmatprep.mubr.f32.mxu0 0.0
      %v939 = vand.u32 %v195, 4294901760
      %v940 = vsub.f32 %v195, %v939
      %v941 = vand.u32 %v940, 4294901760
      %942 = vmatmul.mubr.f32.gmra.mrb[0].mxu0 %v941
      %v943 = vpop.f32.mrb[0].mxu0
      %v944 = vadd.f32 %v759, %v943
      %v945 = vpop.f32.mrb[0].mxu0
      %v946 = vadd.f32 %v761, %v945
      %947 = vmatprep.mubr.f32.mxu0 0.0
      %v948 = vand.u32 %v198, 4294901760
      %v949 = vsub.f32 %v198, %v948
      %v950 = vand.u32 %v949, 4294901760
      %951 = vmatmul.mubr.f32.gmra.mrb[0].mxu0 %v950
      %v952 = vpop.f32.mrb[0].mxu0
      %v953 = vadd.f32 %v767, %v952
      %v954 = vpop.f32.mrb[0].mxu0
      %v955 = vadd.f32 %v769, %v954
      %956 = vmatprep.mubr.f32.mxu0 0.0
      %v957 = vand.u32 %v201, 4294901760
      %v958 = vsub.f32 %v201, %v957
      %v959 = vand.u32 %v958, 4294901760
      %960 = vmatmul.mubr.f32.gmra.mrb[0].mxu0 %v959
      %v961 = vpop.f32.mrb[0].mxu0
      %v962 = vadd.f32 %v775, %v961
      %v963 = vpop.f32.mrb[0].mxu0
      %v964 = vadd.f32 %v777, %v963
      %965 = vmatprep.mubr.f32.mxu0 0.0
      %v966 = vand.u32 %v204, 4294901760
      %v967 = vsub.f32 %v204, %v966
      %v968 = vand.u32 %v967, 4294901760
      %969 = vmatmul.mubr.f32.gmra.mrb[0].mxu0 %v968
      %v970 = vpop.f32.mrb[0].mxu0
      %v971 = vadd.f32 %v783, %v970
      %v972 = vpop.f32.mrb[0].mxu0
      %v973 = vadd.f32 %v785, %v972
      %974 = vdwg.mxu0
      %v975 = vand.u32 %v161, 4294901760
      %v976 = vsub.f32 %v161, %v975
      %v977 = vand.u32 %v976, 4294901760
      %978 = vmatprep.subr.mxu0 %v977
      %v979 = vand.u32 %v160, 4294901760
      %v980 = vsub.f32 %v160, %v979
      %v981 = vand.u32 %v980, 4294901760
      %982 = vmatpush1.msra.mxu0 %v981
      %v983 = vand.u32 %v163, 4294901760
      %v984 = vsub.f32 %v163, %v983
      %v985 = vand.u32 %v984, 4294901760
      %986 = vmatprep.subr.mxu0 %v985
      %v987 = vand.u32 %v162, 4294901760
      %v988 = vsub.f32 %v162, %v987
      %v989 = vand.u32 %v988, 4294901760
      %990 = vmatpush1.msra.mxu0 %v989
      %v991 = vand.u32 %v165, 4294901760
      %v992 = vsub.f32 %v165, %v991
      %v993 = vand.u32 %v992, 4294901760
      %994 = vmatprep.subr.mxu0 %v993
      %v995 = vand.u32 %v164, 4294901760
      %v996 = vsub.f32 %v164, %v995
      %v997 = vand.u32 %v996, 4294901760
      %998 = vmatpush1.msra.mxu0 %v997
      %999 = vmatprep.subr.mxu0 0.0
      %1000 = vmatpush1.msra.mxu0 0.0
      %1001 = vmatprep.subr.mxu0 0.0
      %1002 = vmatpush1.msra.mxu0 0.0
      %1003 = vmatprep.subr.mxu0 0.0
      %1004 = vmatpush1.msra.mxu0 0.0
      %1005 = vmatprep.subr.mxu0 0.0
      %1006 = vmatpush1.msra.mxu0 0.0
      %1007 = vmatprep.subr.mxu0 0.0
      %1008 = vmatpush1.msra.mxu0 0.0
      %1009 = vmatprep.subr.mxu0 0.0
      %1010 = vmatpush1.msra.mxu0 0.0
      %1011 = vmatprep.subr.mxu0 0.0
      %1012 = vmatpush1.msra.mxu0 0.0
      %1013 = vmatprep.subr.mxu0 0.0
      %1014 = vmatpush1.msra.mxu0 0.0
      %1015 = vmatprep.subr.mxu0 0.0
      %1016 = vmatpush1.msra.mxu0 0.0
      %1017 = vmatprep.subr.mxu0 0.0
      %1018 = vmatpush1.msra.mxu0 0.0
      %1019 = vmatprep.subr.mxu0 0.0
      %1020 = vmatpush1.msra.mxu0 0.0
      %1021 = vmatprep.subr.mxu0 0.0
      %1022 = vmatpush1.msra.mxu0 0.0
      %1023 = vmatprep.subr.mxu0 0.0
      %1024 = vmatpush1.msra.mxu0 0.0
      %1025 = vmatprep.subr.mxu0 0.0
      %1026 = vmatpush1.msra.mxu0 0.0
      %1027 = vmatprep.subr.mxu0 0.0
      %1028 = vmatpush1.msra.mxu0 0.0
      %1029 = vmatprep.subr.mxu0 0.0
      %1030 = vmatpush1.msra.mxu0 0.0
      %1031 = vmatprep.subr.mxu0 0.0
      %1032 = vmatpush1.msra.mxu0 0.0
      %1033 = vmatprep.subr.mxu0 0.0
      %1034 = vmatpush1.msra.mxu0 0.0
      %1035 = vmatprep.subr.mxu0 0.0
      %1036 = vmatpush1.msra.mxu0 0.0
      %1037 = vmatprep.subr.mxu0 0.0
      %1038 = vmatpush1.msra.mxu0 0.0
      %1039 = vmatprep.subr.mxu0 0.0
      %1040 = vmatpush1.msra.mxu0 0.0
      %1041 = vmatprep.subr.mxu0 0.0
      %1042 = vmatpush1.msra.mxu0 0.0
      %1043 = vmatprep.subr.mxu0 0.0
      %1044 = vmatpush1.msra.mxu0 0.0
      %1045 = vmatprep.subr.mxu0 0.0
      %1046 = vmatpush1.msra.mxu0 0.0
      %1047 = vmatprep.subr.mxu0 0.0
      %1048 = vmatpush1.msra.mxu0 0.0
      %1049 = vmatprep.subr.mxu0 0.0
      %1050 = vmatpush1.msra.mxu0 0.0
      %1051 = vmatprep.subr.mxu0 0.0
      %1052 = vmatpush1.msra.mxu0 0.0
      %1053 = vmatprep.subr.mxu0 0.0
      %1054 = vmatpush1.msra.mxu0 0.0
      %1055 = vmatprep.subr.mxu0 0.0
      %1056 = vmatpush1.msra.mxu0 0.0
      %1057 = vmatprep.mubr.f32.mxu0 0.0
      %v1058 = vand.u32 %v168, 4294901760
      %1059 = vmatmul.mubr.f32.gmra.mrb[0].mxu0 %v1058
      %v1060 = vpop.f32.mrb[0].mxu0
      %v1061 = vadd.f32 %v863, %v1060
      %v1062 = vpop.f32.mrb[0].mxu0
      %v1063 = vadd.f32 %v865, %v1062
      %1064 = vmatprep.mubr.f32.mxu0 0.0
      %v1065 = vand.u32 %v171, 4294901760
      %1066 = vmatmul.mubr.f32.gmra.mrb[0].mxu0 %v1065
      %v1067 = vpop.f32.mrb[0].mxu0
      %v1068 = vadd.f32 %v872, %v1067
      %v1069 = vpop.f32.mrb[0].mxu0
      %v1070 = vadd.f32 %v874, %v1069
      %1071 = vmatprep.mubr.f32.mxu0 0.0
      %v1072 = vand.u32 %v174, 4294901760
      %1073 = vmatmul.mubr.f32.gmra.mrb[0].mxu0 %v1072
      %v1074 = vpop.f32.mrb[0].mxu0
      %v1075 = vadd.f32 %v881, %v1074
      %v1076 = vpop.f32.mrb[0].mxu0
      %v1077 = vadd.f32 %v883, %v1076
      %1078 = vmatprep.mubr.f32.mxu0 0.0
      %v1079 = vand.u32 %v177, 4294901760
      %1080 = vmatmul.mubr.f32.gmra.mrb[0].mxu0 %v1079
      %v1081 = vpop.f32.mrb[0].mxu0
      %v1082 = vadd.f32 %v890, %v1081
      %v1083 = vpop.f32.mrb[0].mxu0
      %v1084 = vadd.f32 %v892, %v1083
      %1085 = vmatprep.mubr.f32.mxu0 0.0
      %v1086 = vand.u32 %v180, 4294901760
      %1087 = vmatmul.mubr.f32.gmra.mrb[0].mxu0 %v1086
      %v1088 = vpop.f32.mrb[0].mxu0
      %v1089 = vadd.f32 %v899, %v1088
      %v1090 = vpop.f32.mrb[0].mxu0
      %v1091 = vadd.f32 %v901, %v1090
      %1092 = vmatprep.mubr.f32.mxu0 0.0
      %v1093 = vand.u32 %v183, 4294901760
      %1094 = vmatmul.mubr.f32.gmra.mrb[0].mxu0 %v1093
      %v1095 = vpop.f32.mrb[0].mxu0
      %v1096 = vadd.f32 %v908, %v1095
      %v1097 = vpop.f32.mrb[0].mxu0
      %v1098 = vadd.f32 %v910, %v1097
      %1099 = vmatprep.mubr.f32.mxu0 0.0
      %v1100 = vand.u32 %v186, 4294901760
      %1101 = vmatmul.mubr.f32.gmra.mrb[0].mxu0 %v1100
      %v1102 = vpop.f32.mrb[0].mxu0
      %v1103 = vadd.f32 %v917, %v1102
      %v1104 = vpop.f32.mrb[0].mxu0
      %v1105 = vadd.f32 %v919, %v1104
      %1106 = vmatprep.mubr.f32.mxu0 0.0
      %v1107 = vand.u32 %v189, 4294901760
      %1108 = vmatmul.mubr.f32.gmra.mrb[0].mxu0 %v1107
      %v1109 = vpop.f32.mrb[0].mxu0
      %v1110 = vadd.f32 %v926, %v1109
      %v1111 = vpop.f32.mrb[0].mxu0
      %v1112 = vadd.f32 %v928, %v1111
      %1113 = vmatprep.mubr.f32.mxu0 0.0
      %v1114 = vand.u32 %v192, 4294901760
      %1115 = vmatmul.mubr.f32.gmra.mrb[0].mxu0 %v1114
      %v1116 = vpop.f32.mrb[0].mxu0
      %v1117 = vadd.f32 %v935, %v1116
      %v1118 = vpop.f32.mrb[0].mxu0
      %v1119 = vadd.f32 %v937, %v1118
      %1120 = vmatprep.mubr.f32.mxu0 0.0
      %v1121 = vand.u32 %v195, 4294901760
      %1122 = vmatmul.mubr.f32.gmra.mrb[0].mxu0 %v1121
      %v1123 = vpop.f32.mrb[0].mxu0
      %v1124 = vadd.f32 %v944, %v1123
      %v1125 = vpop.f32.mrb[0].mxu0
      %v1126 = vadd.f32 %v946, %v1125
      %1127 = vmatprep.mubr.f32.mxu0 0.0
      %v1128 = vand.u32 %v198, 4294901760
      %1129 = vmatmul.mubr.f32.gmra.mrb[0].mxu0 %v1128
      %v1130 = vpop.f32.mrb[0].mxu0
      %v1131 = vadd.f32 %v953, %v1130
      %v1132 = vpop.f32.mrb[0].mxu0
      %v1133 = vadd.f32 %v955, %v1132
      %1134 = vmatprep.mubr.f32.mxu0 0.0
      %v1135 = vand.u32 %v201, 4294901760
      %1136 = vmatmul.mubr.f32.gmra.mrb[0].mxu0 %v1135
      %v1137 = vpop.f32.mrb[0].mxu0
      %v1138 = vadd.f32 %v962, %v1137
      %v1139 = vpop.f32.mrb[0].mxu0
      %v1140 = vadd.f32 %v964, %v1139
      %1141 = vmatprep.mubr.f32.mxu0 0.0
      %v1142 = vand.u32 %v204, 4294901760
      %1143 = vmatmul.mubr.f32.gmra.mrb[0].mxu0 %v1142
      %v1144 = vpop.f32.mrb[0].mxu0
      %v1145 = vadd.f32 %v971, %v1144
      %v1146 = vpop.f32.mrb[0].mxu0
      %v1147 = vadd.f32 %v973, %v1146
      %1148 = vdwg.mxu0
      %v1149 = vand.u32 %v161, 4294901760
      %1150 = vmatprep.subr.mxu0 %v1149
      %v1151 = vand.u32 %v160, 4294901760
      %1152 = vmatpush1.msra.mxu0 %v1151
      %v1153 = vand.u32 %v163, 4294901760
      %1154 = vmatprep.subr.mxu0 %v1153
      %v1155 = vand.u32 %v162, 4294901760
      %1156 = vmatpush1.msra.mxu0 %v1155
      %v1157 = vand.u32 %v165, 4294901760
      %1158 = vmatprep.subr.mxu0 %v1157
      %v1159 = vand.u32 %v164, 4294901760
      %1160 = vmatpush1.msra.mxu0 %v1159
      %1161 = vmatprep.subr.mxu0 0.0
      %1162 = vmatpush1.msra.mxu0 0.0
      %1163 = vmatprep.subr.mxu0 0.0
      %1164 = vmatpush1.msra.mxu0 0.0
      %1165 = vmatprep.subr.mxu0 0.0
      %1166 = vmatpush1.msra.mxu0 0.0
      %1167 = vmatprep.subr.mxu0 0.0
      %1168 = vmatpush1.msra.mxu0 0.0
      %1169 = vmatprep.subr.mxu0 0.0
      %1170 = vmatpush1.msra.mxu0 0.0
      %1171 = vmatprep.subr.mxu0 0.0
      %1172 = vmatpush1.msra.mxu0 0.0
      %1173 = vmatprep.subr.mxu0 0.0
      %1174 = vmatpush1.msra.mxu0 0.0
      %1175 = vmatprep.subr.mxu0 0.0
      %1176 = vmatpush1.msra.mxu0 0.0
      %1177 = vmatprep.subr.mxu0 0.0
      %1178 = vmatpush1.msra.mxu0 0.0
      %1179 = vmatprep.subr.mxu0 0.0
      %1180 = vmatpush1.msra.mxu0 0.0
      %1181 = vmatprep.subr.mxu0 0.0
      %1182 = vmatpush1.msra.mxu0 0.0
      %1183 = vmatprep.subr.mxu0 0.0
      %1184 = vmatpush1.msra.mxu0 0.0
      %1185 = vmatprep.subr.mxu0 0.0
      %1186 = vmatpush1.msra.mxu0 0.0
      %1187 = vmatprep.subr.mxu0 0.0
      %1188 = vmatpush1.msra.mxu0 0.0
      %1189 = vmatprep.subr.mxu0 0.0
      %1190 = vmatpush1.msra.mxu0 0.0
      %1191 = vmatprep.subr.mxu0 0.0
      %1192 = vmatpush1.msra.mxu0 0.0
      %1193 = vmatprep.subr.mxu0 0.0
      %1194 = vmatpush1.msra.mxu0 0.0
      %1195 = vmatprep.subr.mxu0 0.0
      %1196 = vmatpush1.msra.mxu0 0.0
      %1197 = vmatprep.subr.mxu0 0.0
      %1198 = vmatpush1.msra.mxu0 0.0
      %1199 = vmatprep.subr.mxu0 0.0
      %1200 = vmatpush1.msra.mxu0 0.0
      %1201 = vmatprep.subr.mxu0 0.0
      %1202 = vmatpush1.msra.mxu0 0.0
      %1203 = vmatprep.subr.mxu0 0.0
      %1204 = vmatpush1.msra.mxu0 0.0
      %1205 = vmatprep.subr.mxu0 0.0
      %1206 = vmatpush1.msra.mxu0 0.0
      %1207 = vmatprep.subr.mxu0 0.0
      %1208 = vmatpush1.msra.mxu0 0.0
      %1209 = vmatprep.subr.mxu0 0.0
      %1210 = vmatpush1.msra.mxu0 0.0
      %1211 = vmatprep.subr.mxu0 0.0
      %1212 = vmatpush1.msra.mxu0 0.0
      %1213 = vmatprep.subr.mxu0 0.0
      %1214 = vmatpush1.msra.mxu0 0.0
      %1215 = vmatprep.subr.mxu0 0.0
      %1216 = vmatpush1.msra.mxu0 0.0
      %1217 = vmatprep.subr.mxu0 0.0
      %1218 = vmatpush1.msra.mxu0 0.0
      %1219 = vmatprep.mubr.f32.mxu0 0.0
      %v1220 = vand.u32 %v168, 4294901760
      %1221 = vmatmul.mubr.f32.gmra.mrb[0].mxu0 %v1220
      %v1222 = vpop.f32.mrb[0].mxu0
      %v1223 = vadd.f32 %v1061, %v1222
      %v1224 = vpop.f32.mrb[0].mxu0
      %v1225 = vadd.f32 %v1063, %v1224
      %1226 = vmatprep.mubr.f32.mxu0 0.0
      %v1227 = vand.u32 %v171, 4294901760
      %1228 = vmatmul.mubr.f32.gmra.mrb[0].mxu0 %v1227
      %v1229 = vpop.f32.mrb[0].mxu0
      %v1230 = vadd.f32 %v1068, %v1229
      %v1231 = vpop.f32.mrb[0].mxu0
      %v1232 = vadd.f32 %v1070, %v1231
      %1233 = vmatprep.mubr.f32.mxu0 0.0
      %v1234 = vand.u32 %v174, 4294901760
      %1235 = vmatmul.mubr.f32.gmra.mrb[0].mxu0 %v1234
      %v1236 = vpop.f32.mrb[0].mxu0
      %v1237 = vadd.f32 %v1075, %v1236
      %v1238 = vpop.f32.mrb[0].mxu0
      %v1239 = vadd.f32 %v1077, %v1238
      %1240 = vmatprep.mubr.f32.mxu0 0.0
      %v1241 = vand.u32 %v177, 4294901760
      %1242 = vmatmul.mubr.f32.gmra.mrb[0].mxu0 %v1241
      %v1243 = vpop.f32.mrb[0].mxu0
      %v1244 = vadd.f32 %v1082, %v1243
      %v1245 = vpop.f32.mrb[0].mxu0
      %v1246 = vadd.f32 %v1084, %v1245
      %1247 = vmatprep.mubr.f32.mxu0 0.0
      %v1248 = vand.u32 %v180, 4294901760
      %1249 = vmatmul.mubr.f32.gmra.mrb[0].mxu0 %v1248
      %v1250 = vpop.f32.mrb[0].mxu0
      %v1251 = vadd.f32 %v1089, %v1250
      %v1252 = vpop.f32.mrb[0].mxu0
      %v1253 = vadd.f32 %v1091, %v1252
      %1254 = vmatprep.mubr.f32.mxu0 0.0
      %v1255 = vand.u32 %v183, 4294901760
      %1256 = vmatmul.mubr.f32.gmra.mrb[0].mxu0 %v1255
      %v1257 = vpop.f32.mrb[0].mxu0
      %v1258 = vadd.f32 %v1096, %v1257
      %v1259 = vpop.f32.mrb[0].mxu0
      %v1260 = vadd.f32 %v1098, %v1259
      %1261 = vmatprep.mubr.f32.mxu0 0.0
      %v1262 = vand.u32 %v186, 4294901760
      %1263 = vmatmul.mubr.f32.gmra.mrb[0].mxu0 %v1262
      %v1264 = vpop.f32.mrb[0].mxu0
      %v1265 = vadd.f32 %v1103, %v1264
      %v1266 = vpop.f32.mrb[0].mxu0
      %v1267 = vadd.f32 %v1105, %v1266
      %1268 = vmatprep.mubr.f32.mxu0 0.0
      %v1269 = vand.u32 %v189, 4294901760
      %1270 = vmatmul.mubr.f32.gmra.mrb[0].mxu0 %v1269
      %v1271 = vpop.f32.mrb[0].mxu0
      %v1272 = vadd.f32 %v1110, %v1271
      %v1273 = vpop.f32.mrb[0].mxu0
      %v1274 = vadd.f32 %v1112, %v1273
      %1275 = vmatprep.mubr.f32.mxu0 0.0
      %v1276 = vand.u32 %v192, 4294901760
      %1277 = vmatmul.mubr.f32.gmra.mrb[0].mxu0 %v1276
      %v1278 = vpop.f32.mrb[0].mxu0
      %v1279 = vadd.f32 %v1117, %v1278
      %v1280 = vpop.f32.mrb[0].mxu0
      %v1281 = vadd.f32 %v1119, %v1280
      %1282 = vmatprep.mubr.f32.mxu0 0.0
      %v1283 = vand.u32 %v195, 4294901760
      %1284 = vmatmul.mubr.f32.gmra.mrb[0].mxu0 %v1283
      %v1285 = vpop.f32.mrb[0].mxu0
      %v1286 = vadd.f32 %v1124, %v1285
      %v1287 = vpop.f32.mrb[0].mxu0
      %v1288 = vadd.f32 %v1126, %v1287
      %1289 = vmatprep.mubr.f32.mxu0 0.0
      %v1290 = vand.u32 %v198, 4294901760
      %1291 = vmatmul.mubr.f32.gmra.mrb[0].mxu0 %v1290
      %v1292 = vpop.f32.mrb[0].mxu0
      %v1293 = vadd.f32 %v1131, %v1292
      %v1294 = vpop.f32.mrb[0].mxu0
      %v1295 = vadd.f32 %v1133, %v1294
      %1296 = vmatprep.mubr.f32.mxu0 0.0
      %v1297 = vand.u32 %v201, 4294901760
      %1298 = vmatmul.mubr.f32.gmra.mrb[0].mxu0 %v1297
      %v1299 = vpop.f32.mrb[0].mxu0
      %v1300 = vadd.f32 %v1138, %v1299
      %v1301 = vpop.f32.mrb[0].mxu0
      %v1302 = vadd.f32 %v1140, %v1301
      %1303 = vmatprep.mubr.f32.mxu0 0.0
      %v1304 = vand.u32 %v204, 4294901760
      %1305 = vmatmul.mubr.f32.gmra.mrb[0].mxu0 %v1304
      %v1306 = vpop.f32.mrb[0].mxu0
      %v1307 = vadd.f32 %v1145, %v1306
      %v1308 = vpop.f32.mrb[0].mxu0
      %v1309 = vadd.f32 %v1147, %v1308
      %1310 = vdwg.mxu0
      %v1311 = vmax.f32 %v1223, %v1225
      %1312 = vmax.xlane.f32.xlu0 %v1311
      %v1313 = vpop.xlane.xlu0 %1312
      %v1314 = vmax.f32 %v1230, %v1232
      %1315 = vmax.xlane.f32.xlu0 %v1314
      %v1316 = vpop.xlane.xlu0 %1315
      %v1317 = vmax.f32 %v1237, %v1239
      %1318 = vmax.xlane.f32.xlu0 %v1317
      %v1319 = vpop.xlane.xlu0 %1318
      %v1320 = vmax.f32 %v1244, %v1246
      %1321 = vmax.xlane.f32.xlu0 %v1320
      %v1322 = vpop.xlane.xlu0 %1321
      %v1323 = vmax.f32 %v1251, %v1253
      %1324 = vmax.xlane.f32.xlu0 %v1323
      %v1325 = vpop.xlane.xlu0 %1324
      %v1326 = vmax.f32 %v1258, %v1260
      %1327 = vmax.xlane.f32.xlu0 %v1326
      %v1328 = vpop.xlane.xlu0 %1327
      %v1329 = vmax.f32 %v1265, %v1267
      %1330 = vmax.xlane.f32.xlu0 %v1329
      %v1331 = vpop.xlane.xlu0 %1330
      %v1332 = vmax.f32 %v1272, %v1274
      %1333 = vmax.xlane.f32.xlu0 %v1332
      %v1334 = vpop.xlane.xlu0 %1333
      %v1335 = vmax.f32 %v1279, %v1281
      %1336 = vmax.xlane.f32.xlu0 %v1335
      %v1337 = vpop.xlane.xlu0 %1336
      %v1338 = vmax.f32 %v1286, %v1288
      %1339 = vmax.xlane.f32.xlu0 %v1338
      %v1340 = vpop.xlane.xlu0 %1339
      %v1341 = vmax.f32 %v1293, %v1295
      %1342 = vmax.xlane.f32.xlu0 %v1341
      %v1343 = vpop.xlane.xlu0 %1342
      %v1344 = vmax.f32 %v1300, %v1302
      %1345 = vmax.xlane.f32.xlu0 %v1344
      %v1346 = vpop.xlane.xlu0 %1345
      %v1347 = vmax.f32 %v1307, %v1309
      %1348 = vmax.xlane.f32.xlu0 %v1347
      %v1349 = vpop.xlane.xlu0 %1348
      %v1350 = vsub.f32 %v1223, %v1313
      %v1351 = vsub.f32 %v1225, %v1313
      %v1352 = vsub.f32 %v1230, %v1316
      %v1353 = vsub.f32 %v1232, %v1316
      %v1354 = vsub.f32 %v1237, %v1319
      %v1355 = vsub.f32 %v1239, %v1319
      %v1356 = vsub.f32 %v1244, %v1322
      %v1357 = vsub.f32 %v1246, %v1322
      %v1358 = vsub.f32 %v1251, %v1325
      %v1359 = vsub.f32 %v1253, %v1325
      %v1360 = vsub.f32 %v1258, %v1328
      %v1361 = vsub.f32 %v1260, %v1328
      %v1362 = vsub.f32 %v1265, %v1331
      %v1363 = vsub.f32 %v1267, %v1331
      %v1364 = vsub.f32 %v1272, %v1334
      %v1365 = vsub.f32 %v1274, %v1334
      %v1366 = vsub.f32 %v1279, %v1337
      %v1367 = vsub.f32 %v1281, %v1337
      %v1368 = vsub.f32 %v1286, %v1340
      %v1369 = vsub.f32 %v1288, %v1340
      %v1370 = vsub.f32 %v1293, %v1343
      %v1371 = vsub.f32 %v1295, %v1343
      %v1372 = vsub.f32 %v1300, %v1346
      %v1373 = vsub.f32 %v1302, %v1346
      %v1374 = vsub.f32 %v1307, %v1349
      %v1375 = vsub.f32 %v1309, %v1349
      %v1376 = vmul.f32 %v1350, 1.442695
      %v1377 = vpow.pop %v1376
      %v1378 = vmul.f32 %v1351, 1.442695
      %v1379 = vpow.pop %v1378
      %v1380 = vmul.f32 %v1352, 1.442695
      %v1381 = vpow.pop %v1380
      %v1382 = vmul.f32 %v1353, 1.442695
      %v1383 = vpow.pop %v1382
      %v1384 = vmul.f32 %v1354, 1.442695
      %v1385 = vpow.pop %v1384
      %v1386 = vmul.f32 %v1355, 1.442695
      %v1387 = vpow.pop %v1386
      %v1388 = vmul.f32 %v1356, 1.442695
      %v1389 = vpow.pop %v1388
      %v1390 = vmul.f32 %v1357, 1.442695
      %v1391 = vpow.pop %v1390
      %v1392 = vmul.f32 %v1358, 1.442695
      %v1393 = vpow.pop %v1392
      %v1394 = vmul.f32 %v1359, 1.442695
      %v1395 = vpow.pop %v1394
      %v1396 = vmul.f32 %v1360, 1.442695
      %v1397 = vpow.pop %v1396
      %v1398 = vmul.f32 %v1361, 1.442695
      %v1399 = vpow.pop %v1398
      %v1400 = vmul.f32 %v1362, 1.442695
      %v1401 = vpow.pop %v1400
      %v1402 = vmul.f32 %v1363, 1.442695
      %v1403 = vpow.pop %v1402
      %v1404 = vmul.f32 %v1364, 1.442695
      %v1405 = vpow.pop %v1404
      %v1406 = vmul.f32 %v1365, 1.442695
      %v1407 = vpow.pop %v1406
      %v1408 = vmul.f32 %v1366, 1.442695
      %v1409 = vpow.pop %v1408
      %v1410 = vmul.f32 %v1367, 1.442695
      %v1411 = vpow.pop %v1410
      %v1412 = vmul.f32 %v1368, 1.442695
      %v1413 = vpow.pop %v1412
      %v1414 = vmul.f32 %v1369, 1.442695
      %v1415 = vpow.pop %v1414
      %v1416 = vmul.f32 %v1370, 1.442695
      %v1417 = vpow.pop %v1416
      %v1418 = vmul.f32 %v1371, 1.442695
      %v1419 = vpow.pop %v1418
      %v1420 = vmul.f32 %v1372, 1.442695
      %v1421 = vpow.pop %v1420
      %v1422 = vmul.f32 %v1373, 1.442695
      %v1423 = vpow.pop %v1422
      %v1424 = vmul.f32 %v1374, 1.442695
      %v1425 = vpow.pop %v1424
      %v1426 = vmul.f32 %v1375, 1.442695
      %v1427 = vpow.pop %v1426
      %v1428 = vadd.f32 %v1377, %v1379
      %1429 = vadd.xlane.f32.xlu0 %v1428
      %v1430 = vpop.xlane.xlu0 %1429
      %v1431 = vadd.f32 %v1381, %v1383
      %1432 = vadd.xlane.f32.xlu0 %v1431
      %v1433 = vpop.xlane.xlu0 %1432
      %v1434 = vadd.f32 %v1385, %v1387
      %1435 = vadd.xlane.f32.xlu0 %v1434
      %v1436 = vpop.xlane.xlu0 %1435
      %v1437 = vadd.f32 %v1389, %v1391
      %1438 = vadd.xlane.f32.xlu0 %v1437
      %v1439 = vpop.xlane.xlu0 %1438
      %v1440 = vadd.f32 %v1393, %v1395
      %1441 = vadd.xlane.f32.xlu0 %v1440
      %v1442 = vpop.xlane.xlu0 %1441
      %v1443 = vadd.f32 %v1397, %v1399
      %1444 = vadd.xlane.f32.xlu0 %v1443
      %v1445 = vpop.xlane.xlu0 %1444
      %v1446 = vadd.f32 %v1401, %v1403
      %1447 = vadd.xlane.f32.xlu0 %v1446
      %v1448 = vpop.xlane.xlu0 %1447
      %v1449 = vadd.f32 %v1405, %v1407
      %1450 = vadd.xlane.f32.xlu0 %v1449
      %v1451 = vpop.xlane.xlu0 %1450
      %v1452 = vadd.f32 %v1409, %v1411
      %1453 = vadd.xlane.f32.xlu0 %v1452
      %v1454 = vpop.xlane.xlu0 %1453
      %v1455 = vadd.f32 %v1413, %v1415
      %1456 = vadd.xlane.f32.xlu0 %v1455
      %v1457 = vpop.xlane.xlu0 %1456
      %v1458 = vadd.f32 %v1417, %v1419
      %1459 = vadd.xlane.f32.xlu0 %v1458
      %v1460 = vpop.xlane.xlu0 %1459
      %v1461 = vadd.f32 %v1421, %v1423
      %1462 = vadd.xlane.f32.xlu0 %v1461
      %v1463 = vpop.xlane.xlu0 %1462
      %v1464 = vadd.f32 %v1425, %v1427
      %1465 = vadd.xlane.f32.xlu0 %v1464
      %v1466 = vpop.xlane.xlu0 %1465
      %v1467 = vlog2.pop %v1430
      %v1468 = vmul.f32 %v1467, 0.6931472
      %v1469 = vlog2.pop %v1433
      %v1470 = vmul.f32 %v1469, 0.6931472
      %v1471 = vlog2.pop %v1436
      %v1472 = vmul.f32 %v1471, 0.6931472
      %v1473 = vlog2.pop %v1439
      %v1474 = vmul.f32 %v1473, 0.6931472
      %v1475 = vlog2.pop %v1442
      %v1476 = vmul.f32 %v1475, 0.6931472
      %v1477 = vlog2.pop %v1445
      %v1478 = vmul.f32 %v1477, 0.6931472
      %v1479 = vlog2.pop %v1448
      %v1480 = vmul.f32 %v1479, 0.6931472
      %v1481 = vlog2.pop %v1451
      %v1482 = vmul.f32 %v1481, 0.6931472
      %v1483 = vlog2.pop %v1454
      %v1484 = vmul.f32 %v1483, 0.6931472
      %v1485 = vlog2.pop %v1457
      %v1486 = vmul.f32 %v1485, 0.6931472
      %v1487 = vlog2.pop %v1460
      %v1488 = vmul.f32 %v1487, 0.6931472
      %v1489 = vlog2.pop %v1463
      %v1490 = vmul.f32 %v1489, 0.6931472
      %v1491 = vlog2.pop %v1466
      %v1492 = vmul.f32 %v1491, 0.6931472
      %v1493 = vadd.f32 %v1313, %v1468
      %v1494 = vadd.f32 %v1316, %v1470
      %v1495 = vadd.f32 %v1319, %v1472
      %v1496 = vadd.f32 %v1322, %v1474
      %v1497 = vadd.f32 %v1325, %v1476
      %v1498 = vadd.f32 %v1328, %v1478
      %v1499 = vadd.f32 %v1331, %v1480
      %v1500 = vadd.f32 %v1334, %v1482
      %v1501 = vadd.f32 %v1337, %v1484
      %v1502 = vadd.f32 %v1340, %v1486
      %v1503 = vadd.f32 %v1343, %v1488
      %v1504 = vadd.f32 %v1346, %v1490
      %v1505 = vadd.f32 %v1349, %v1492
      %v1506 = vmul.f32 %v1493, %v147
      %v1507 = vmul.f32 %v1494, %v148
      %v1508 = vmul.f32 %v1495, %v149
      %v1509 = vmul.f32 %v1496, %v150
      %v1510 = vmul.f32 %v1497, %v151
      %v1511 = vmul.f32 %v1498, %v152
      %v1512 = vmul.f32 %v1499, %v153
      %v1513 = vmul.f32 %v1500, %v154
      %v1514 = vmul.f32 %v1501, %v155
      %v1515 = vmul.f32 %v1502, %v156
      %v1516 = vmul.f32 %v1503, %v157
      %v1517 = vmul.f32 %v1504, %v158
      %v1518 = vmul.f32 %v1505, %v159
      %v1519 = vsub.f32 0.0, %v1506
      %v1520 = vsub.f32 0.0, %v1507
      %v1521 = vsub.f32 0.0, %v1508
      %v1522 = vsub.f32 0.0, %v1509
      %v1523 = vsub.f32 0.0, %v1510
      %v1524 = vsub.f32 0.0, %v1511
      %v1525 = vsub.f32 0.0, %v1512
      %v1526 = vsub.f32 0.0, %v1513
      %v1527 = vsub.f32 0.0, %v1514
      %v1528 = vsub.f32 0.0, %v1515
      %v1529 = vsub.f32 0.0, %v1516
      %v1530 = vsub.f32 0.0, %v1517
      %v1531 = vsub.f32 0.0, %v1518
      %1545 = vrot.lane.b32.xlu0 %v1519, 110
      %v1546 = vpop.permute.xlu0 %1545
      %1547 = vrot.lane.b32.xlu0 %v1520, 110
      %v1548 = vpop.permute.xlu0 %1547
      %1549 = vrot.lane.b32.xlu0 %v1521, 110
      %v1550 = vpop.permute.xlu0 %1549
      %1551 = vrot.lane.b32.xlu0 %v1522, 110
      %v1552 = vpop.permute.xlu0 %1551
      %1553 = vrot.lane.b32.xlu0 %v1523, 110
      %v1554 = vpop.permute.xlu0 %1553
      %1555 = vrot.lane.b32.xlu0 %v1524, 110
      %v1556 = vpop.permute.xlu0 %1555
      %1557 = vrot.lane.b32.xlu0 %v1525, 110
      %v1558 = vpop.permute.xlu0 %1557
      %1559 = vrot.lane.b32.xlu0 %v1526, 110
      %v1560 = vpop.permute.xlu0 %1559
      %1561 = vrot.lane.b32.xlu0 %v1527, 110
      %v1562 = vpop.permute.xlu0 %1561
      %1563 = vrot.lane.b32.xlu0 %v1528, 110
      %v1564 = vpop.permute.xlu0 %1563
      %1565 = vrot.lane.b32.xlu0 %v1529, 110
      %v1566 = vpop.permute.xlu0 %1565
      %1567 = vrot.lane.b32.xlu0 %v1530, 110
      %v1568 = vpop.permute.xlu0 %1567
      %1569 = vrot.lane.b32.xlu0 %v1531, 110
      %v1570 = vpop.permute.xlu0 %1569
      %vm1584 = vcmask 7168
      %1585 = vst.msk [vmem:[%s145] sm:$0xff] %vm1584, %v1546
      %1586 = vst.msk [vmem:[%s145 + $0x8] sm:$0xff] %vm1584, %v1548
      %1587 = vst.msk [vmem:[%s145 + $0x10] sm:$0xff] %vm1584, %v1550
      %1588 = vst.msk [vmem:[%s145 + $0x18] sm:$0xff] %vm1584, %v1552
      %1589 = vst.msk [vmem:[%s145 + $0x20] sm:$0xff] %vm1584, %v1554
      %1590 = vst.msk [vmem:[%s145 + $0x28] sm:$0xff] %vm1584, %v1556
      %1591 = vst.msk [vmem:[%s145 + $0x30] sm:$0xff] %vm1584, %v1558
      %1592 = vst.msk [vmem:[%s145 + $0x38] sm:$0xff] %vm1584, %v1560
      %1593 = vst.msk [vmem:[%s145 + $0x40] sm:$0xff] %vm1584, %v1562
      %1594 = vst.msk [vmem:[%s145 + $0x48] sm:$0xff] %vm1584, %v1564
      %1595 = vst.msk [vmem:[%s145 + $0x50] sm:$0xff] %vm1584, %v1566
      %1596 = vst.msk [vmem:[%s145 + $0x58] sm:$0xff] %vm1584, %v1568
      %1597 = vst.msk [vmem:[%s145 + $0x60] sm:$0xff] %vm1584, %v1570
      %s1598 = smul.u32 13, %s13
      %p1599 = scmp.lt.s32.totalorder %s1598, 25
      %s1600 = scalar_select %p1599, %s1598, 25
      %s1601 = smul.addr %s1600, 8
      %s1602 = scalar_lea.vmem %s2, %s1601
      // Predicated region
      $region29: #{tpu_custom_call.1} parent=27 // pred_check
        %p1603 = pneg %p78
      $region30: #{tpu_custom_call.1} parent=27 // pred_check_branch
        %1605 = sbr.rel (%p1603) target = $region32
      $region31: #{tpu_custom_call.1} parent=27 // pred_region
        %s1606 = smul.u32 13, %s13
      $region32: #{tpu_custom_call.1} parent=27 // pred_fallthru
        _
    $region28: #{tpu_custom_call.1} parent=5 // pred_fallthru
      _
    %p1607 = scmp.le.s32.totalorder 2, %s8
    // Predicated region
    $region33: #{tpu_custom_call.1} parent=5 // pred_check
      %p1608 = pneg %p1607
    $region34: #{tpu_custom_call.1} parent=5 // pred_check_branch
      %1610 = sbr.rel (%p1608) target = $region36
    $region35: #{tpu_custom_call.1} parent=5 // pred_region
      %s1611 = ssub.s32 %s8, 2
      // Predicated region
      $region37: #{tpu_custom_call.1} parent=35 // pred_check
        %p1612 = pneg %p84
      $region38: #{tpu_custom_call.1} parent=35 // pred_check_branch
        %1614 = sbr.rel (%p1612) target = $region40
      $region39: #{tpu_custom_call.1} parent=35 // pred_region
        %s1615 = smul.u32 13, %s14
        %p1616 = scmp.lt.s32.totalorder %s1615, 25
        %s1617 = scalar_select %p1616, %s1615, 25
        %s1618 = smul.addr %s1617, 8
        %s1619 = scalar_lea.vmem %s2, %s1618
      $region40: #{tpu_custom_call.1} parent=35 // pred_fallthru
        _
    $region36: #{tpu_custom_call.1} parent=5 // pred_fallthru
      _
  $region6: #{tpu_custom_call.1} parent=0 // loop_footer
    %s12 = sadd.s32 1, %s8
  $region7: #{tpu_custom_call.1} parent=0 // loop_footer_branch
    %7 = sbr.rel target = $region3
  $region8: #{tpu_custom_call.1} parent=0 // loop_exit
    _

</llo_original>
